<compile_context>
chip_gen: v6e
topology: v6e:2x2x1
jax: 0.10.0
libtpu: 0.0.40
codegen_flags: <defaults>
</compile_context>

<pallas_src>
import jax
import jax.numpy as jnp
import numpy as np
from jax.experimental import pallas as pl
from jax.experimental.pallas import tpu as pltpu

INPUT_CHANNELS = 4
CONTEXT_SIZE = 8
SIGNAL_LEN = 50
FLAT_IN = INPUT_CHANNELS * SIGNAL_LEN        # 200
CANVAS = 64                                  # per-channel lane stride of conv outputs
CTX_LANE = 52                                # lanes 52..59 of the conv3 canvas hold ctx feats
_LRELU_SLOPE = 0.3                           # nn.LeakyReLU(negative_slope=0.3)
_SQRT_2_OVER_PI = 0.7978845608028654

# conv shapes (stride 1): (cin, cout, ksz, pad, len_in, len_out)
#   conv1: 4->8 k4 p2: 50 -> 51 ; conv2: 8->4 k4 p2: 51 -> 52 ; conv3: 4->1 k4 p1: 52 -> 51
W1_SHAPE = (FLAT_IN, 8 * CANVAS)             # (200, 512)
W2_SHAPE = (8 * CANVAS, 4 * CANVAS)          # (512, 256)
W3_SHAPE = (4 * CANVAS, CANVAS)              # (256, 64)

# Packed small-FC weight slab (f32; cast to bf16 per-slice in the kernel): name -> (row, K, N)
FC_LAYOUT = {
    "wc1": (0, CONTEXT_SIZE, 16),            # linear_context1^T
    "wc2": (8, 16, CANVAS),                  # linear_context2^T placed in cols 52..59
    "wl1": (24, CANVAS, 20),                 # fused linear (sig rows 0..50, ctx rows 52..59)
    "wl2": (88, 20, 10),
    "wl3": (112, 10, 2),
}
FCW_ROWS, FCW_COLS = 128, CANVAS

BIAS_COLS = 8 * CANVAS                       # 512 (widest bias row)
BIAS_ROW = {"conv1": 0, "conv2": 1, "conv3": 2, "bc1": 3, "bc2": 4,
            "bl1": 5, "bl2": 6, "bl3": 7}


def _round_up(x, m):
    return (x + m - 1) // m * m


# ---------------------------------------------------------------------------
# In-kernel math helpers.
# ---------------------------------------------------------------------------
def _gelu(x):
    # tanh-approximate GELU; tanh lands on the EUP slot.
    return 0.5 * x * (1.0 + jnp.tanh(_SQRT_2_OVER_PI * (x + 0.044715 * (x * x * x))))


def _leaky_relu(x):
    return jnp.where(x >= 0, x, _LRELU_SLOPE * x)


# ---------------------------------------------------------------------------
# The Pallas kernel: TB samples per grid step, all matmuls on the MXU.
# ---------------------------------------------------------------------------
def _prediction_kernel(sig_ref, ctx_ref, w1_ref, w2_ref, w3_ref, fcw_ref, fb_ref, out_ref):
    # sig_ref: (TB, 200) f32   flattened channel-major signals
    # ctx_ref: (TB, 8)   f32
    # w1/w2/w3_ref: banded conv weights, bf16, VMEM-resident
    # fcw_ref: (128, 64) f32 packed small-FC weight slab
    # fb_ref : (8, 512)  f32 packed bias slab
    # out_ref: (TB, 2)   f32
    f32, bf16 = jnp.float32, jnp.bfloat16

    def fcw(name):
        row, k, n = FC_LAYOUT[name]
        return fcw_ref[pl.ds(row, k), pl.ds(0, n)].astype(bf16)

    def bias(name, n):
        return fb_ref[pl.ds(BIAS_ROW[name], 1), pl.ds(0, n)]            # (1, n) f32

    # ---- conv stack as banded MXU matmuls (bf16 operands, f32 accumulation) ----
    x = sig_ref[...].astype(bf16)                                        # (TB, 200)
    y = jnp.dot(x, w1_ref[...], preferred_element_type=f32) + bias("conv1", 8 * CANVAS)
    y = _gelu(y).astype(bf16)                                            # (TB, 512)
    y = jnp.dot(y, w2_ref[...], preferred_element_type=f32) + bias("conv2", 4 * CANVAS)
    y = _gelu(y).astype(bf16)                                            # (TB, 256)
    h = jnp.dot(y, w3_ref[...], preferred_element_type=f32) + bias("conv3", CANVAS)
    h = _gelu(h)                                                         # (TB, 64); lanes >= 51 exactly 0

    # ---- context MLP; 2nd layer lands its 8 features in lanes 52..59 of a 64-lane canvas ----
    c = ctx_ref[...].astype(bf16)                                        # (TB, 8)
    c = _gelu(jnp.dot(c, fcw("wc1"), preferred_element_type=f32) + bias("bc1", 16))
    c64 = _gelu(jnp.dot(c.astype(bf16), fcw("wc2"), preferred_element_type=f32)
                + bias("bc2", CANVAS))                                   # (TB, 64); only lanes 52..59 nonzero

    # torch.cat([sig_feats, ctx_feats]) @ Wl1  ==  (h + c64) @ wl1_fused  (disjoint lanes)
    f = jnp.dot((h + c64).astype(bf16), fcw("wl1"), preferred_element_type=f32) + bias("bl1", 20)
    f = _leaky_relu(f)
    f = _gelu(jnp.dot(f.astype(bf16), fcw("wl2"), preferred_element_type=f32) + bias("bl2", 10))
    f = jnp.dot(f.astype(bf16), fcw("wl3"), preferred_element_type=f32) + bias("bl3", 2)
    out_ref[...] = f.astype(out_ref.dtype)


# ---------------------------------------------------------------------------
# Parameter packing (host-side; done once offline in a real deployment).
# ---------------------------------------------------------------------------
def _banded_conv_weight(w, pad, lin, lout, in_stride, out_stride):
    # w: (cout, cin, ksz) torch Conv1d layout  ->  (cin*in_stride, cout*out_stride)
    cout, cin, ksz = w.shape
    W = np.zeros((cin * in_stride, cout * out_stride), np.float32)
    for co in range(cout):
        for ci in range(cin):
            for lo in range(lout):
                for t in range(ksz):
                    li = lo + t - pad
                    if 0 <= li < lin:
                        W[ci * in_stride + li, co * out_stride + lo] = w[co, ci, t]
    return W


def _bias_row(b, lout, out_stride, width):
    row = np.zeros((width,), np.float32)
    for co in range(b.shape[0]):
        row[co * out_stride: co * out_stride + lout] = b[co]
    return row


def _pack_params(p):
    q = {k: np.asarray(v, np.float32) for k, v in p.items()}

    w1b = _banded_conv_weight(q["w1"], pad=2, lin=50, lout=51, in_stride=SIGNAL_LEN, out_stride=CANVAS)
    w2b = _banded_conv_weight(q["w2"], pad=2, lin=51, lout=52, in_stride=CANVAS, out_stride=CANVAS)
    w3b = _banded_conv_weight(q["w3"], pad=1, lin=52, lout=51, in_stride=CANVAS, out_stride=CANVAS)

    wl1 = q["wl1"]                                          # (20, 59) torch (out, in)
    wl1_fused = np.zeros((CANVAS, 20), np.float32)
    wl1_fused[0:51, :] = wl1[:, 0:51].T                     # signal features, lanes 0..50
    wl1_fused[CTX_LANE:CTX_LANE + CONTEXT_SIZE, :] = wl1[:, 51:59].T    # ctx features, lanes 52..59
    wc2_pad = np.zeros((16, CANVAS), np.float32)
    wc2_pad[:, CTX_LANE:CTX_LANE + CONTEXT_SIZE] = q["wc2"].T           # (16, 8) into cols 52..59

    mats = {"wc1": q["wc1"].T, "wc2": wc2_pad, "wl1": wl1_fused,
            "wl2": q["wl2"].T, "wl3": q["wl3"].T}
    fcw = np.zeros((FCW_ROWS, FCW_COLS), np.float32)
    for name, (row, k, n) in FC_LAYOUT.items():
        fcw[row:row + k, :n] = mats[name]

    fb = np.zeros((8, BIAS_COLS), np.float32)
    fb[BIAS_ROW["conv1"], :8 * CANVAS] = _bias_row(q["b1"], 51, CANVAS, 8 * CANVAS)
    fb[BIAS_ROW["conv2"], :4 * CANVAS] = _bias_row(q["b2"], 52, CANVAS, 4 * CANVAS)
    fb[BIAS_ROW["conv3"], :CANVAS] = _bias_row(q["b3"], 51, CANVAS, CANVAS)
    fb[BIAS_ROW["bc1"], :16] = q["bc1"]
    fb[BIAS_ROW["bc2"], CTX_LANE:CTX_LANE + CONTEXT_SIZE] = q["bc2"]
    fb[BIAS_ROW["bl1"], :20] = q["bl1"]
    fb[BIAS_ROW["bl2"], :10] = q["bl2"]
    fb[BIAS_ROW["bl3"], :2] = q["bl3"]

    return (jnp.asarray(w1b, jnp.bfloat16), jnp.asarray(w2b, jnp.bfloat16),
            jnp.asarray(w3b, jnp.bfloat16), jnp.asarray(fcw), jnp.asarray(fb))


# ---------------------------------------------------------------------------
# Wrapper: layout plumbing + pallas_call.
# ---------------------------------------------------------------------------
def prediction_model(signals, context, params, *, block_batch=512):
    B, cin, L = signals.shape
    assert cin == INPUT_CHANNELS and L == SIGNAL_LEN
    assert context.shape == (B, CONTEXT_SIZE)

    # Tile selection: big tiles to amortize per-step overhead, but aim for >= 2
    # grid steps so the "parallel" batch axis spans both v7x TensorCores.
    tb = max(8, _round_up(int(block_batch), 8))
    if B < 2 * tb:
        tb = max(8, _round_up((B + 1) // 2, 8))
    tb = min(tb, _round_up(B, 8))
    bp = _round_up(B, tb)
    n_tiles = bp // tb

    # Free contiguous reshape (B,4,50)->(B,200); channel-major layout and zero
    # padding live inside the banded conv1 weight (no transpose / lane pad).
    sig2d = signals.reshape(B, FLAT_IN).astype(jnp.float32)
    ctx = context.astype(jnp.float32)
    if bp != B:                                  # pad ragged batch only when needed
        sig2d = jnp.pad(sig2d, ((0, bp - B), (0, 0)))
        ctx = jnp.pad(ctx, ((0, bp - B), (0, 0)))

    w1b, w2b, w3b, fcw, fb = _pack_params(params)

    flops = 2 * bp * (FLAT_IN * 8 * CANVAS + 8 * CANVAS * 4 * CANVAS + 4 * CANVAS * CANVAS
                      + 8 * 16 + 16 * CANVAS + CANVAS * 20 + 20 * 10 + 10 * 2)
    transcendentals = bp * (8 * CANVAS + 4 * CANVAS + CANVAS + 16 + CANVAS + 10)
    bytes_accessed = ((sig2d.size + ctx.size + fcw.size + fb.size + bp * 2) * 4
                      + (w1b.size + w2b.size + w3b.size) * 2)

    out = pl.pallas_call(
        _prediction_kernel,
        grid=(n_tiles,),
        in_specs=[
            pl.BlockSpec((tb, FLAT_IN), lambda b: (b, 0)),
            pl.BlockSpec((tb, CONTEXT_SIZE), lambda b: (b, 0)),
            pl.BlockSpec(W1_SHAPE, lambda b: (0, 0)),          # constant index -> fetched once
            pl.BlockSpec(W2_SHAPE, lambda b: (0, 0)),
            pl.BlockSpec(W3_SHAPE, lambda b: (0, 0)),
            pl.BlockSpec((FCW_ROWS, FCW_COLS), lambda b: (0, 0)),
            pl.BlockSpec((8, BIAS_COLS), lambda b: (0, 0)),
        ],
        out_specs=pl.BlockSpec((tb, 2), lambda b: (b, 0)),
        out_shape=jax.ShapeDtypeStruct((bp, 2), jnp.float32),
        compiler_params=pltpu.CompilerParams(dimension_semantics=("parallel",)),
        cost_estimate=pl.CostEstimate(flops=int(flops), transcendentals=int(transcendentals),
                                      bytes_accessed=int(bytes_accessed)),
    )(sig2d, ctx, w1b, w2b, w3b, fcw, fb)

    out1 = out[:B]
    return out1, out1 * 2.0        # module returns (x, x * 2); 2x done outside the kernel


# ---------------------------------------------------------------------------
# Deterministic parameter init (torch layouts: conv (Cout, Cin, K), lin (out, in)).
# ---------------------------------------------------------------------------
def init_params(key):
    def u(k, shape, fan_in):
        bound = 1.0 / float(np.sqrt(fan_in))
        return jax.random.uniform(k, shape, jnp.float32, -bound, bound)

    ks = jax.random.split(key, 16)
    return {
        "w1": u(ks[0], (8, 4, 4), 16),   "b1": u(ks[1], (8,), 16),
        "w2": u(ks[2], (4, 8, 4), 32),   "b2": u(ks[3], (4,), 32),
        "w3": u(ks[4], (1, 4, 4), 16),   "b3": u(ks[5], (1,), 16),
        "wc1": u(ks[6], (16, 8), 8),     "bc1": u(ks[7], (16,), 8),
        "wc2": u(ks[8], (8, 16), 16),    "bc2": u(ks[9], (8,), 16),
        "wl1": u(ks[10], (20, 59), 59),  "bl1": u(ks[11], (20,), 59),
        "wl2": u(ks[12], (10, 20), 20),  "bl2": u(ks[13], (10,), 20),
        "wl3": u(ks[14], (2, 10), 10),   "bl3": u(ks[15], (2,), 10),
    }


# ---------------------------------------------------------------------------
# Pure-JAX reference (exact erf GELU, XLA conv) for the numerical check.
# ---------------------------------------------------------------------------
def reference_forward(signals, context, p):
    hi = jax.lax.Precision.HIGHEST

    def conv1d(x, w, b, pad):
        y = jax.lax.conv_general_dilated(
            x, w, window_strides=(1,), padding=[(pad, pad)],
            dimension_numbers=("NCH", "OIH", "NCH"), precision=hi)
        return y + b[None, :, None]

    gelu = lambda v: jax.nn.gelu(v, approximate=False)
    lrelu = lambda v: jnp.where(v >= 0, v, _LRELU_SLOPE * v)
    lin = lambda v, w, b: jnp.dot(v, w.T, precision=hi) + b

    x = gelu(conv1d(signals, p["w1"], p["b1"], 2))
    x = gelu(conv1d(x, p["w2"], p["b2"], 2))
    x = gelu(conv1d(x, p["w3"], p["b3"], 1))
    x = x.reshape(x.shape[0], -1)
    c = gelu(lin(context, p["wc1"], p["bc1"]))
    c = gelu(lin(c, p["wc2"], p["bc2"]))
    x = jnp.concatenate([x, c], axis=1)
    x = lrelu(lin(x, p["wl1"], p["bl1"]))
    x = gelu(lin(x, p["wl2"], p["bl2"]))
    x = lin(x, p["wl3"], p["bl3"])
    return x, x * 2


if __name__ == "__main__":
    key = jax.random.PRNGKey(0)
    k_sig, k_ctx, k_par, k_sig2, k_ctx2 = jax.random.split(key, 5)
    params = init_params(k_par)

    # Small check (single tile, padded batch).
    B = 2
    signals = jax.random.normal(k_sig, (B, INPUT_CHANNELS, SIGNAL_LEN), jnp.float32)
    context = jax.random.normal(k_ctx, (B, CONTEXT_SIZE), jnp.float32)
    out1, out2 = prediction_model(signals, context, params)
    jax.block_until_ready((out1, out2))
    assert out1.shape == (B, 2) and out2.shape == (B, 2)
    ref1, ref2 = reference_forward(signals, context, params)
    np.testing.assert_allclose(np.asarray(out1), np.asarray(ref1), rtol=2e-2, atol=2e-2)
    np.testing.assert_allclose(np.asarray(out2), np.asarray(ref2), rtol=2e-2, atol=2e-2)

    # Multi-tile / ragged-batch check (grid of 3, small tile).
    B2 = 19
    signals2 = jax.random.normal(k_sig2, (B2, INPUT_CHANNELS, SIGNAL_LEN), jnp.float32)
    context2 = jax.random.normal(k_ctx2, (B2, CONTEXT_SIZE), jnp.float32)
    o1, o2 = prediction_model(signals2, context2, params, block_batch=8)
    jax.block_until_ready((o1, o2))
    r1, r2 = reference_forward(signals2, context2, params)
    np.testing.assert_allclose(np.asarray(o1), np.asarray(r1), rtol=2e-2, atol=2e-2)
    np.testing.assert_allclose(np.asarray(o2), np.asarray(r2), rtol=2e-2, atol=2e-2)

    print("KERNEL_OK")
</pallas_src>

<mosaic_0001>
module attributes {stable_mosaic.version = 11 : i64} {
  func.func @_prediction_kernel(%arg0: i32, %arg1: memref<8x200xf32, #tpu.memory_space<vmem>>, %arg2: memref<8x8xf32, #tpu.memory_space<vmem>>, %arg3: memref<200x512xbf16, #tpu.memory_space<vmem>>, %arg4: memref<512x256xbf16, #tpu.memory_space<vmem>>, %arg5: memref<256x64xbf16, #tpu.memory_space<vmem>>, %arg6: memref<128x64xf32, #tpu.memory_space<vmem>>, %arg7: memref<8x512xf32, #tpu.memory_space<vmem>>, %arg8: memref<8x2xf32, #tpu.memory_space<vmem>>) attributes {dimension_semantics = [#tpu.dimension_semantics<parallel>], iteration_bounds = array<i64: 1>, scalar_prefetch = 0 : i64, scratch_operands = 0 : i64, tpu.core_type = #tpu.core_type<tc>, window_params = [{transform_indices = @transform_0, window_bounds = array<i64: 8, 200>}, {transform_indices = @transform_1, window_bounds = array<i64: 8, 8>}, {pipeline_mode = #tpu.pipeline_mode<synchronous>, transform_indices = @transform_2, window_bounds = array<i64: 200, 512>}, {pipeline_mode = #tpu.pipeline_mode<synchronous>, transform_indices = @transform_3, window_bounds = array<i64: 512, 256>}, {pipeline_mode = #tpu.pipeline_mode<synchronous>, transform_indices = @transform_4, window_bounds = array<i64: 256, 64>}, {pipeline_mode = #tpu.pipeline_mode<synchronous>, transform_indices = @transform_5, window_bounds = array<i64: 128, 64>}, {pipeline_mode = #tpu.pipeline_mode<synchronous>, transform_indices = @transform_6, window_bounds = array<i64: 8, 512>}, {transform_indices = @transform_7, window_bounds = array<i64: 8, 2>}]} {
    %c0 = arith.constant 0 : index
    %c0_0 = arith.constant 0 : index
    %0 = vector.load %arg1[%c0, %c0_0] : memref<8x200xf32, #tpu.memory_space<vmem>>, vector<8x200xf32>
    %1 = arith.truncf %0 : vector<8x200xf32> to vector<8x200xbf16>
    %c0_1 = arith.constant 0 : index
    %c0_2 = arith.constant 0 : index
    %2 = vector.load %arg3[%c0_1, %c0_2] : memref<200x512xbf16, #tpu.memory_space<vmem>>, vector<200x512xbf16>
    %cst = arith.constant dense<0.000000e+00> : vector<8x512xf32>
    %3 = tpu.matmul %1, %2, %cst {dimension_numbers = #tpu.dot_dimension_numbers<[1], [0], [0], [1], [0, 0, 1, 1], [], []>} : vector<8x200xbf16>, vector<200x512xbf16>, vector<8x512xf32> -> vector<8x512xf32>
    %c0_3 = arith.constant 0 : index
    %c0_4 = arith.constant 0 : index
    %4 = vector.load %arg7[%c0_3, %c0_4] : memref<8x512xf32, #tpu.memory_space<vmem>>, vector<1x512xf32>
    %5 = vector.broadcast %4 : vector<1x512xf32> to vector<8x512xf32>
    %6 = arith.addf %3, %5 : vector<8x512xf32>
    %cst_5 = arith.constant 5.000000e-01 : f32
    %7 = vector.broadcast %cst_5 : f32 to vector<8x512xf32>
    %8 = arith.mulf %7, %6 : vector<8x512xf32>
    %9 = arith.mulf %6, %6 : vector<8x512xf32>
    %10 = arith.mulf %9, %6 : vector<8x512xf32>
    %cst_6 = arith.constant 4.471500e-02 : f32
    %11 = vector.broadcast %cst_6 : f32 to vector<8x512xf32>
    %12 = arith.mulf %11, %10 : vector<8x512xf32>
    %13 = arith.addf %6, %12 : vector<8x512xf32>
    %cst_7 = arith.constant 0.797884583 : f32
    %14 = vector.broadcast %cst_7 : f32 to vector<8x512xf32>
    %15 = arith.mulf %14, %13 : vector<8x512xf32>
    %16 = math.tanh %15 : vector<8x512xf32>
    %cst_8 = arith.constant 1.000000e+00 : f32
    %17 = vector.broadcast %cst_8 : f32 to vector<8x512xf32>
    %18 = arith.addf %17, %16 : vector<8x512xf32>
    %19 = arith.mulf %8, %18 : vector<8x512xf32>
    %20 = arith.truncf %19 : vector<8x512xf32> to vector<8x512xbf16>
    %c0_9 = arith.constant 0 : index
    %c0_10 = arith.constant 0 : index
    %21 = vector.load %arg4[%c0_9, %c0_10] : memref<512x256xbf16, #tpu.memory_space<vmem>>, vector<512x256xbf16>
    %cst_11 = arith.constant dense<0.000000e+00> : vector<8x256xf32>
    %22 = tpu.matmul %20, %21, %cst_11 {dimension_numbers = #tpu.dot_dimension_numbers<[1], [0], [0], [1], [0, 0, 1, 1], [], []>} : vector<8x512xbf16>, vector<512x256xbf16>, vector<8x256xf32> -> vector<8x256xf32>
    %c1 = arith.constant 1 : index
    %c0_12 = arith.constant 0 : index
    %23 = vector.load %arg7[%c1, %c0_12] : memref<8x512xf32, #tpu.memory_space<vmem>>, vector<1x256xf32>
    %24 = vector.broadcast %23 : vector<1x256xf32> to vector<8x256xf32>
    %25 = arith.addf %22, %24 : vector<8x256xf32>
    %cst_13 = arith.constant 5.000000e-01 : f32
    %26 = vector.broadcast %cst_13 : f32 to vector<8x256xf32>
    %27 = arith.mulf %26, %25 : vector<8x256xf32>
    %28 = arith.mulf %25, %25 : vector<8x256xf32>
    %29 = arith.mulf %28, %25 : vector<8x256xf32>
    %cst_14 = arith.constant 4.471500e-02 : f32
    %30 = vector.broadcast %cst_14 : f32 to vector<8x256xf32>
    %31 = arith.mulf %30, %29 : vector<8x256xf32>
    %32 = arith.addf %25, %31 : vector<8x256xf32>
    %cst_15 = arith.constant 0.797884583 : f32
    %33 = vector.broadcast %cst_15 : f32 to vector<8x256xf32>
    %34 = arith.mulf %33, %32 : vector<8x256xf32>
    %35 = math.tanh %34 : vector<8x256xf32>
    %cst_16 = arith.constant 1.000000e+00 : f32
    %36 = vector.broadcast %cst_16 : f32 to vector<8x256xf32>
    %37 = arith.addf %36, %35 : vector<8x256xf32>
    %38 = arith.mulf %27, %37 : vector<8x256xf32>
    %39 = arith.truncf %38 : vector<8x256xf32> to vector<8x256xbf16>
    %c0_17 = arith.constant 0 : index
    %c0_18 = arith.constant 0 : index
    %40 = vector.load %arg5[%c0_17, %c0_18] : memref<256x64xbf16, #tpu.memory_space<vmem>>, vector<256x64xbf16>
    %cst_19 = arith.constant dense<0.000000e+00> : vector<8x64xf32>
    %41 = tpu.matmul %39, %40, %cst_19 {dimension_numbers = #tpu.dot_dimension_numbers<[1], [0], [0], [1], [0, 0, 1, 1], [], []>} : vector<8x256xbf16>, vector<256x64xbf16>, vector<8x64xf32> -> vector<8x64xf32>
    %c2 = arith.constant 2 : index
    %c0_20 = arith.constant 0 : index
    %42 = vector.load %arg7[%c2, %c0_20] : memref<8x512xf32, #tpu.memory_space<vmem>>, vector<1x64xf32>
    %43 = vector.broadcast %42 : vector<1x64xf32> to vector<8x64xf32>
    %44 = arith.addf %41, %43 : vector<8x64xf32>
    %cst_21 = arith.constant 5.000000e-01 : f32
    %45 = vector.broadcast %cst_21 : f32 to vector<8x64xf32>
    %46 = arith.mulf %45, %44 : vector<8x64xf32>
    %47 = arith.mulf %44, %44 : vector<8x64xf32>
    %48 = arith.mulf %47, %44 : vector<8x64xf32>
    %cst_22 = arith.constant 4.471500e-02 : f32
    %49 = vector.broadcast %cst_22 : f32 to vector<8x64xf32>
    %50 = arith.mulf %49, %48 : vector<8x64xf32>
    %51 = arith.addf %44, %50 : vector<8x64xf32>
    %cst_23 = arith.constant 0.797884583 : f32
    %52 = vector.broadcast %cst_23 : f32 to vector<8x64xf32>
    %53 = arith.mulf %52, %51 : vector<8x64xf32>
    %54 = math.tanh %53 : vector<8x64xf32>
    %cst_24 = arith.constant 1.000000e+00 : f32
    %55 = vector.broadcast %cst_24 : f32 to vector<8x64xf32>
    %56 = arith.addf %55, %54 : vector<8x64xf32>
    %57 = arith.mulf %46, %56 : vector<8x64xf32>
    %c0_25 = arith.constant 0 : index
    %c0_26 = arith.constant 0 : index
    %58 = vector.load %arg2[%c0_25, %c0_26] : memref<8x8xf32, #tpu.memory_space<vmem>>, vector<8x8xf32>
    %59 = arith.truncf %58 : vector<8x8xf32> to vector<8x8xbf16>
    %c0_27 = arith.constant 0 : index
    %c0_28 = arith.constant 0 : index
    %60 = vector.load %arg6[%c0_27, %c0_28] : memref<128x64xf32, #tpu.memory_space<vmem>>, vector<8x16xf32>
    %61 = arith.truncf %60 : vector<8x16xf32> to vector<8x16xbf16>
    %cst_29 = arith.constant dense<0.000000e+00> : vector<8x16xf32>
    %62 = tpu.matmul %59, %61, %cst_29 {dimension_numbers = #tpu.dot_dimension_numbers<[1], [0], [0], [1], [0, 0, 1, 1], [], []>} : vector<8x8xbf16>, vector<8x16xbf16>, vector<8x16xf32> -> vector<8x16xf32>
    %c3 = arith.constant 3 : index
    %c0_30 = arith.constant 0 : index
    %63 = vector.load %arg7[%c3, %c0_30] : memref<8x512xf32, #tpu.memory_space<vmem>>, vector<1x16xf32>
    %64 = vector.broadcast %63 : vector<1x16xf32> to vector<8x16xf32>
    %65 = arith.addf %62, %64 : vector<8x16xf32>
    %cst_31 = arith.constant 5.000000e-01 : f32
    %66 = vector.broadcast %cst_31 : f32 to vector<8x16xf32>
    %67 = arith.mulf %66, %65 : vector<8x16xf32>
    %68 = arith.mulf %65, %65 : vector<8x16xf32>
    %69 = arith.mulf %68, %65 : vector<8x16xf32>
    %cst_32 = arith.constant 4.471500e-02 : f32
    %70 = vector.broadcast %cst_32 : f32 to vector<8x16xf32>
    %71 = arith.mulf %70, %69 : vector<8x16xf32>
    %72 = arith.addf %65, %71 : vector<8x16xf32>
    %cst_33 = arith.constant 0.797884583 : f32
    %73 = vector.broadcast %cst_33 : f32 to vector<8x16xf32>
    %74 = arith.mulf %73, %72 : vector<8x16xf32>
    %75 = math.tanh %74 : vector<8x16xf32>
    %cst_34 = arith.constant 1.000000e+00 : f32
    %76 = vector.broadcast %cst_34 : f32 to vector<8x16xf32>
    %77 = arith.addf %76, %75 : vector<8x16xf32>
    %78 = arith.mulf %67, %77 : vector<8x16xf32>
    %79 = arith.truncf %78 : vector<8x16xf32> to vector<8x16xbf16>
    %c8 = arith.constant 8 : index
    %c0_35 = arith.constant 0 : index
    %80 = vector.load %arg6[%c8, %c0_35] : memref<128x64xf32, #tpu.memory_space<vmem>>, vector<16x64xf32>
    %81 = arith.truncf %80 : vector<16x64xf32> to vector<16x64xbf16>
    %cst_36 = arith.constant dense<0.000000e+00> : vector<8x64xf32>
    %82 = tpu.matmul %79, %81, %cst_36 {dimension_numbers = #tpu.dot_dimension_numbers<[1], [0], [0], [1], [0, 0, 1, 1], [], []>} : vector<8x16xbf16>, vector<16x64xbf16>, vector<8x64xf32> -> vector<8x64xf32>
    %c4 = arith.constant 4 : index
    %c0_37 = arith.constant 0 : index
    %83 = vector.load %arg7[%c4, %c0_37] : memref<8x512xf32, #tpu.memory_space<vmem>>, vector<1x64xf32>
    %84 = vector.broadcast %83 : vector<1x64xf32> to vector<8x64xf32>
    %85 = arith.addf %82, %84 : vector<8x64xf32>
    %cst_38 = arith.constant 5.000000e-01 : f32
    %86 = vector.broadcast %cst_38 : f32 to vector<8x64xf32>
    %87 = arith.mulf %86, %85 : vector<8x64xf32>
    %88 = arith.mulf %85, %85 : vector<8x64xf32>
    %89 = arith.mulf %88, %85 : vector<8x64xf32>
    %cst_39 = arith.constant 4.471500e-02 : f32
    %90 = vector.broadcast %cst_39 : f32 to vector<8x64xf32>
    %91 = arith.mulf %90, %89 : vector<8x64xf32>
    %92 = arith.addf %85, %91 : vector<8x64xf32>
    %cst_40 = arith.constant 0.797884583 : f32
    %93 = vector.broadcast %cst_40 : f32 to vector<8x64xf32>
    %94 = arith.mulf %93, %92 : vector<8x64xf32>
    %95 = math.tanh %94 : vector<8x64xf32>
    %cst_41 = arith.constant 1.000000e+00 : f32
    %96 = vector.broadcast %cst_41 : f32 to vector<8x64xf32>
    %97 = arith.addf %96, %95 : vector<8x64xf32>
    %98 = arith.mulf %87, %97 : vector<8x64xf32>
    %99 = arith.addf %57, %98 : vector<8x64xf32>
    %100 = arith.truncf %99 : vector<8x64xf32> to vector<8x64xbf16>
    %c24 = arith.constant 24 : index
    %c0_42 = arith.constant 0 : index
    %101 = vector.load %arg6[%c24, %c0_42] : memref<128x64xf32, #tpu.memory_space<vmem>>, vector<64x20xf32>
    %102 = arith.truncf %101 : vector<64x20xf32> to vector<64x20xbf16>
    %cst_43 = arith.constant dense<0.000000e+00> : vector<8x20xf32>
    %103 = tpu.matmul %100, %102, %cst_43 {dimension_numbers = #tpu.dot_dimension_numbers<[1], [0], [0], [1], [0, 0, 1, 1], [], []>} : vector<8x64xbf16>, vector<64x20xbf16>, vector<8x20xf32> -> vector<8x20xf32>
    %c5 = arith.constant 5 : index
    %c0_44 = arith.constant 0 : index
    %104 = vector.load %arg7[%c5, %c0_44] : memref<8x512xf32, #tpu.memory_space<vmem>>, vector<1x20xf32>
    %105 = vector.broadcast %104 : vector<1x20xf32> to vector<8x20xf32>
    %106 = arith.addf %103, %105 : vector<8x20xf32>
    %cst_45 = arith.constant 0.000000e+00 : f32
    %107 = vector.broadcast %cst_45 : f32 to vector<8x20xf32>
    %108 = arith.cmpf oge, %106, %107 : vector<8x20xf32>
    %cst_46 = arith.constant 3.000000e-01 : f32
    %109 = vector.broadcast %cst_46 : f32 to vector<8x20xf32>
    %110 = arith.mulf %109, %106 : vector<8x20xf32>
    %111 = arith.select %108, %106, %110 : vector<8x20xi1>, vector<8x20xf32>
    %112 = arith.truncf %111 : vector<8x20xf32> to vector<8x20xbf16>
    %c88 = arith.constant 88 : index
    %c0_47 = arith.constant 0 : index
    %113 = vector.load %arg6[%c88, %c0_47] : memref<128x64xf32, #tpu.memory_space<vmem>>, vector<20x10xf32>
    %114 = arith.truncf %113 : vector<20x10xf32> to vector<20x10xbf16>
    %cst_48 = arith.constant dense<0.000000e+00> : vector<8x10xf32>
    %115 = tpu.matmul %112, %114, %cst_48 {dimension_numbers = #tpu.dot_dimension_numbers<[1], [0], [0], [1], [0, 0, 1, 1], [], []>} : vector<8x20xbf16>, vector<20x10xbf16>, vector<8x10xf32> -> vector<8x10xf32>
    %c6 = arith.constant 6 : index
    %c0_49 = arith.constant 0 : index
    %116 = vector.load %arg7[%c6, %c0_49] : memref<8x512xf32, #tpu.memory_space<vmem>>, vector<1x10xf32>
    %117 = vector.broadcast %116 : vector<1x10xf32> to vector<8x10xf32>
    %118 = arith.addf %115, %117 : vector<8x10xf32>
    %cst_50 = arith.constant 5.000000e-01 : f32
    %119 = vector.broadcast %cst_50 : f32 to vector<8x10xf32>
    %120 = arith.mulf %119, %118 : vector<8x10xf32>
    %121 = arith.mulf %118, %118 : vector<8x10xf32>
    %122 = arith.mulf %121, %118 : vector<8x10xf32>
    %cst_51 = arith.constant 4.471500e-02 : f32
    %123 = vector.broadcast %cst_51 : f32 to vector<8x10xf32>
    %124 = arith.mulf %123, %122 : vector<8x10xf32>
    %125 = arith.addf %118, %124 : vector<8x10xf32>
    %cst_52 = arith.constant 0.797884583 : f32
    %126 = vector.broadcast %cst_52 : f32 to vector<8x10xf32>
    %127 = arith.mulf %126, %125 : vector<8x10xf32>
    %128 = math.tanh %127 : vector<8x10xf32>
    %cst_53 = arith.constant 1.000000e+00 : f32
    %129 = vector.broadcast %cst_53 : f32 to vector<8x10xf32>
    %130 = arith.addf %129, %128 : vector<8x10xf32>
    %131 = arith.mulf %120, %130 : vector<8x10xf32>
    %132 = arith.truncf %131 : vector<8x10xf32> to vector<8x10xbf16>
    %c112 = arith.constant 112 : index
    %c0_54 = arith.constant 0 : index
    %133 = vector.load %arg6[%c112, %c0_54] : memref<128x64xf32, #tpu.memory_space<vmem>>, vector<10x2xf32>
    %134 = arith.truncf %133 : vector<10x2xf32> to vector<10x2xbf16>
    %cst_55 = arith.constant dense<0.000000e+00> : vector<8x2xf32>
    %135 = tpu.matmul %132, %134, %cst_55 {dimension_numbers = #tpu.dot_dimension_numbers<[1], [0], [0], [1], [0, 0, 1, 1], [], []>} : vector<8x10xbf16>, vector<10x2xbf16>, vector<8x2xf32> -> vector<8x2xf32>
    %c7 = arith.constant 7 : index
    %c0_56 = arith.constant 0 : index
    %136 = vector.load %arg7[%c7, %c0_56] : memref<8x512xf32, #tpu.memory_space<vmem>>, vector<1x2xf32>
    %137 = vector.broadcast %136 : vector<1x2xf32> to vector<8x2xf32>
    %138 = arith.addf %135, %137 : vector<8x2xf32>
    %c0_57 = arith.constant 0 : index
    %c0_58 = arith.constant 0 : index
    %139 = vector.load %arg8[%c0_57, %c0_58] : memref<8x2xf32, #tpu.memory_space<vmem>>, vector<8x2xf32>
    tpu.vector_store %arg8[%c0_57, %c0_58], %138 {strides = array<i32>} : memref<8x2xf32, #tpu.memory_space<vmem>>, vector<8x2xf32>,
    return
  }
  func.func @transform_0(%arg0: i32) -> (i32, i32) {
    %c0_i32 = arith.constant 0 : i32
    %c0_i32_0 = arith.constant 0 : i32
    return %arg0, %c0_i32 : i32, i32
  }
  func.func @transform_1(%arg0: i32) -> (i32, i32) {
    %c0_i32 = arith.constant 0 : i32
    %c0_i32_0 = arith.constant 0 : i32
    return %arg0, %c0_i32 : i32, i32
  }
  func.func @transform_2(%arg0: i32) -> (i32, i32) {
    %c0_i32 = arith.constant 0 : i32
    %c0_i32_0 = arith.constant 0 : i32
    %c0_i32_1 = arith.constant 0 : i32
    return %c0_i32, %c0_i32_0 : i32, i32
  }
  func.func @transform_3(%arg0: i32) -> (i32, i32) {
    %c0_i32 = arith.constant 0 : i32
    %c0_i32_0 = arith.constant 0 : i32
    %c0_i32_1 = arith.constant 0 : i32
    return %c0_i32, %c0_i32_0 : i32, i32
  }
  func.func @transform_4(%arg0: i32) -> (i32, i32) {
    %c0_i32 = arith.constant 0 : i32
    %c0_i32_0 = arith.constant 0 : i32
    %c0_i32_1 = arith.constant 0 : i32
    return %c0_i32, %c0_i32_0 : i32, i32
  }
  func.func @transform_5(%arg0: i32) -> (i32, i32) {
    %c0_i32 = arith.constant 0 : i32
    %c0_i32_0 = arith.constant 0 : i32
    %c0_i32_1 = arith.constant 0 : i32
    return %c0_i32, %c0_i32_0 : i32, i32
  }
  func.func @transform_6(%arg0: i32) -> (i32, i32) {
    %c0_i32 = arith.constant 0 : i32
    %c0_i32_0 = arith.constant 0 : i32
    %c0_i32_1 = arith.constant 0 : i32
    return %c0_i32, %c0_i32_0 : i32, i32
  }
  func.func @transform_7(%arg0: i32) -> (i32, i32) {
    %c0_i32 = arith.constant 0 : i32
    %c0_i32_0 = arith.constant 0 : i32
    return %arg0, %c0_i32 : i32, i32
  }
}

</mosaic_0001>

<llo_original>
// kernel: tpu_custom_call.1
$region0: #{tpu_custom_call.1}
  #allocation0 [shape = 'u32[]', space=smem, size = 0x4, offset = 0x4, fixed_abs, tag = 'smem constant byte address 0x4 - core index']
  #allocation1 [shape = 'u32[144,128]{1,0:T(1,128)}', space=vmem, size = 0x12000, scoped, tag = 'internal scratch']
  %s0 = inlined_call_operand.vmem [shape: f32[8,200], index: 0, kind: input, shape index: {}]
  %s1 = inlined_call_operand.vmem [shape: f32[8,8], index: 1, kind: input, shape index: {}]
  %s2 = inlined_call_operand.hbm [shape: bf16[200,512], index: 2, kind: input, shape index: {}]
  %s3 = inlined_call_operand.hbm [shape: bf16[512,256], index: 3, kind: input, shape index: {}]
  %s4 = inlined_call_operand.vmem [shape: bf16[256,64], index: 4, kind: input, shape index: {}]
  %s5 = inlined_call_operand.vmem [shape: f32[128,64], index: 5, kind: input, shape index: {}]
  %s6 = inlined_call_operand.vmem [shape: f32[8,512], index: 6, kind: input, shape index: {}]
  %s7 = inlined_call_operand.vmem [shape: f32[8,2], index: 7, kind: output, shape index: {}]
  %s8 = sld [smem:[#allocation0]]
  $region46: #{tpu_custom_call.1} parent=0
    _
  %s10 = ssub.s32 1, %s8
  %s11 = scalar_select 0, %s10, %s8
  $region1: #{tpu_custom_call.1} parent=0
    #allocation2 [shape = 'u8[204800]{0}', space=vmem, size = 0x32000, scoped, tag = 'input window, operand 2, single buffered']
    #allocation3 [shape = 's32[1]{0}', space=sflag, size = 0x4, scoped, tag = 'scoped memory for tpu_custom_call.1']
    #allocation4 [shape = 'u8[262144]{0}', space=vmem, size = 0x40000, scoped, tag = 'input window, operand 3, single buffered']
    #allocation5 [shape = 's32[1]{0}', space=sflag, size = 0x4, scoped, tag = 'scoped memory for tpu_custom_call.1']
    %12 = vsyncpa [#allocation3], 0
    %13 = vsyncpa [#allocation5], 0
    // Predicated region
    $region2: #{tpu_custom_call.1} parent=1 // pred_check
      _
    $region3: #{tpu_custom_call.1} parent=1 // pred_check_branch
      %15 = sbr.rel (0) target = $region5
    $region4: #{tpu_custom_call.1} parent=1 // pred_region
      _
    $region5: #{tpu_custom_call.1} parent=1 // pred_fallthru
      _
    // Predicated region
    $region6: #{tpu_custom_call.1} parent=1 // pred_check
      _
    $region7: #{tpu_custom_call.1} parent=1 // pred_check_branch
      %17 = sbr.rel (0) target = $region9
    $region8: #{tpu_custom_call.1} parent=1 // pred_region
      _
    $region9: #{tpu_custom_call.1} parent=1 // pred_fallthru
      _
    // Predicated region
    $region10: #{tpu_custom_call.1} parent=1 // pred_check
      _
    $region11: #{tpu_custom_call.1} parent=1 // pred_check_branch
      %19 = sbr.rel (0) target = $region13
    $region12: #{tpu_custom_call.1} parent=1 // pred_region
      %s21 = ssub.s32 6400, 6400
      %22 = vsyncadd [#allocation3], %s21
      %s23 = sshll.u32 [#allocation2], 4
      %s24 = int_to_ptr.vmem [resolvable:$true] %s23
      %29 = dma.hbm_to_vmem [thread:$0]  %s2, 6400, %s24, [#allocation3], 256, 256, 16
    $region13: #{tpu_custom_call.1} parent=1 // pred_fallthru
      _
    // Predicated region
    $region14: #{tpu_custom_call.1} parent=1 // pred_check
      _
    $region15: #{tpu_custom_call.1} parent=1 // pred_check_branch
      %31 = sbr.rel (0) target = $region17
    $region16: #{tpu_custom_call.1} parent=1 // pred_region
      %s33 = ssub.s32 8192, 8192
      %34 = vsyncadd [#allocation5], %s33
      %s35 = sshll.u32 [#allocation4], 4
      %s36 = int_to_ptr.vmem [resolvable:$true] %s35
      %41 = dma.hbm_to_vmem [thread:$0]  %s3, 8192, %s36, [#allocation5], 128, 128, 8
    $region17: #{tpu_custom_call.1} parent=1 // pred_fallthru
      _
    // Predicated region
    $region18: #{tpu_custom_call.1} parent=1 // pred_check
      _
    $region19: #{tpu_custom_call.1} parent=1 // pred_check_branch
      %43 = sbr.rel (0) target = $region21
    $region20: #{tpu_custom_call.1} parent=1 // pred_region
      _
    $region21: #{tpu_custom_call.1} parent=1 // pred_fallthru
      _
    // Predicated region
    $region22: #{tpu_custom_call.1} parent=1 // pred_check
      _
    $region23: #{tpu_custom_call.1} parent=1 // pred_check_branch
      %45 = sbr.rel (0) target = $region25
    $region24: #{tpu_custom_call.1} parent=1 // pred_region
      _
    $region25: #{tpu_custom_call.1} parent=1 // pred_fallthru
      _
    // Predicated region
    $region26: #{tpu_custom_call.1} parent=1 // pred_check
      _
    $region27: #{tpu_custom_call.1} parent=1 // pred_check_branch
      %47 = sbr.rel (0) target = $region29
    $region28: #{tpu_custom_call.1} parent=1 // pred_region
      _
    $region29: #{tpu_custom_call.1} parent=1 // pred_fallthru
      _
    // Predicated region
    $region30: #{tpu_custom_call.1} parent=1 // pred_check
      _
    $region31: #{tpu_custom_call.1} parent=1 // pred_check_branch
      %49 = sbr.rel (0) target = $region33
    $region32: #{tpu_custom_call.1} parent=1 // pred_region
      %50 = dma.done [#allocation3], 6400
    $region33: #{tpu_custom_call.1} parent=1 // pred_fallthru
      _
    // Predicated region
    $region34: #{tpu_custom_call.1} parent=1 // pred_check
      _
    $region35: #{tpu_custom_call.1} parent=1 // pred_check_branch
      %52 = sbr.rel (0) target = $region37
    $region36: #{tpu_custom_call.1} parent=1 // pred_region
      %53 = dma.done [#allocation5], 8192
    $region37: #{tpu_custom_call.1} parent=1 // pred_fallthru
      _
    %v55 = vld [vmem:[%s0] sm:$0xff]
    %v56 = vld [vmem:[%s0 + $0x8] sm:$0xff]
    %v57 = vpack.c.bf16 %v55, %v55
    %v58 = vpack.c.bf16 %v56, %v56
    %v59 = vld [vmem:[#allocation2] sm:$0xff]
    %v60 = vld [vmem:[#allocation2 + $0x8] sm:$0xff]
    %v61 = vld [vmem:[#allocation2 + $0x10] sm:$0xff]
    %v62 = vld [vmem:[#allocation2 + $0x18] sm:$0xff]
    %v63 = vld [vmem:[#allocation2 + $0x20] sm:$0xff]
    %v64 = vld [vmem:[#allocation2 + $0x28] sm:$0xff]
    %v65 = vld [vmem:[#allocation2 + $0x30] sm:$0xff]
    %v66 = vld [vmem:[#allocation2 + $0x38] sm:$0xff]
    %v67 = vld [vmem:[#allocation2 + $0x40] sm:$0xff]
    %v68 = vld [vmem:[#allocation2 + $0x48] sm:$0xff]
    %v69 = vld [vmem:[#allocation2 + $0x50] sm:$0xff]
    %v70 = vld [vmem:[#allocation2 + $0x58] sm:$0xff]
    %v71 = vld [vmem:[#allocation2 + $0x60] sm:$0xff]
    %v72 = vld [vmem:[#allocation2 + $0x68] sm:$0xff]
    %v73 = vld [vmem:[#allocation2 + $0x70] sm:$0xff]
    %v74 = vld [vmem:[#allocation2 + $0x78] sm:$0xff]
    %v75 = vld [vmem:[#allocation2 + $0x80] sm:$0xff]
    %v76 = vld [vmem:[#allocation2 + $0x88] sm:$0xff]
    %v77 = vld [vmem:[#allocation2 + $0x90] sm:$0xff]
    %v78 = vld [vmem:[#allocation2 + $0x98] sm:$0xff]
    %v79 = vld [vmem:[#allocation2 + $0xa0] sm:$0xff]
    %v80 = vld [vmem:[#allocation2 + $0xa8] sm:$0xff]
    %v81 = vld [vmem:[#allocation2 + $0xb0] sm:$0xff]
    %v82 = vld [vmem:[#allocation2 + $0xb8] sm:$0xff]
    %v83 = vld [vmem:[#allocation2 + $0xc0] sm:$0xff]
    %v84 = vld [vmem:[#allocation2 + $0xc8] sm:$0xff]
    %v85 = vld [vmem:[#allocation2 + $0xd0] sm:$0xff]
    %v86 = vld [vmem:[#allocation2 + $0xd8] sm:$0xff]
    %v87 = vld [vmem:[#allocation2 + $0xe0] sm:$0xff]
    %v88 = vld [vmem:[#allocation2 + $0xe8] sm:$0xff]
    %v89 = vld [vmem:[#allocation2 + $0xf0] sm:$0xff]
    %v90 = vld [vmem:[#allocation2 + $0xf8] sm:$0xff]
    %v91 = vld [vmem:[#allocation2 + $0x100] sm:$0xff]
    %v92 = vld [vmem:[#allocation2 + $0x108] sm:$0xff]
    %v93 = vld [vmem:[#allocation2 + $0x110] sm:$0xff]
    %v94 = vld [vmem:[#allocation2 + $0x118] sm:$0xff]
    %v95 = vld [vmem:[#allocation2 + $0x120] sm:$0xff]
    %v96 = vld [vmem:[#allocation2 + $0x128] sm:$0xff]
    %v97 = vld [vmem:[#allocation2 + $0x130] sm:$0xff]
    %v98 = vld [vmem:[#allocation2 + $0x138] sm:$0xff]
    %v99 = vld [vmem:[#allocation2 + $0x140] sm:$0xff]
    %v100 = vld [vmem:[#allocation2 + $0x148] sm:$0xff]
    %v101 = vld [vmem:[#allocation2 + $0x150] sm:$0xff]
    %v102 = vld [vmem:[#allocation2 + $0x158] sm:$0xff]
    %v103 = vld [vmem:[#allocation2 + $0x160] sm:$0xff]
    %v104 = vld [vmem:[#allocation2 + $0x168] sm:$0xff]
    %v105 = vld [vmem:[#allocation2 + $0x170] sm:$0xff]
    %v106 = vld [vmem:[#allocation2 + $0x178] sm:$0xff]
    %v107 = vld [vmem:[#allocation2 + $0x180] sm:$0xff]
    %v108 = vld [vmem:[#allocation2 + $0x188] sm:$0xff]
    %v109 = vld [vmem:[%s6] ss:$8 sm:$0xf]
    %v111 = vlaneseq
    %v112 = vshrl.u32 %v111, 7
    %v113 = vsub.s32 0, %v112
    %v114 = vrot.slane %v109, %v113
    %v115 = vlaneseq
    %v116 = vshrl.u32 %v115, 7
    %v117 = vsub.s32 1, %v116
    %v118 = vrot.slane %v109, %v117
    %v119 = vlaneseq
    %v120 = vshrl.u32 %v119, 7
    %v121 = vsub.s32 2, %v120
    %v122 = vrot.slane %v109, %v121
    %v123 = vlaneseq
    %v124 = vshrl.u32 %v123, 7
    %v125 = vsub.s32 3, %v124
    %v126 = vrot.slane %v109, %v125
    %v181 = vunpack.c.l.b16 %v59
    %v182 = vunpack.c.h.b16 %v59
    %v183 = vunpack.c.l.b16 %v60
    %v184 = vunpack.c.h.b16 %v60
    %v185 = vunpack.c.l.b16 %v61
    %v186 = vunpack.c.h.b16 %v61
    %v187 = vunpack.c.l.b16 %v62
    %v188 = vunpack.c.h.b16 %v62
    %v189 = vunpack.c.l.b16 %v63
    %v190 = vunpack.c.h.b16 %v63
    %v191 = vunpack.c.l.b16 %v64
    %v192 = vunpack.c.h.b16 %v64
    %v193 = vunpack.c.l.b16 %v65
    %v194 = vunpack.c.h.b16 %v65
    %v195 = vunpack.c.l.b16 %v66
    %v196 = vunpack.c.h.b16 %v66
    %v197 = vunpack.c.l.b16 %v67
    %v198 = vunpack.c.h.b16 %v67
    %v199 = vunpack.c.l.b16 %v68
    %v200 = vunpack.c.h.b16 %v68
    %v201 = vunpack.c.l.b16 %v69
    %v202 = vunpack.c.h.b16 %v69
    %v203 = vunpack.c.l.b16 %v70
    %v204 = vunpack.c.h.b16 %v70
    %v205 = vunpack.c.l.b16 %v71
    %v206 = vunpack.c.h.b16 %v71
    %v207 = vunpack.c.l.b16 %v72
    %v208 = vunpack.c.h.b16 %v72
    %v209 = vunpack.c.l.b16 %v73
    %v210 = vunpack.c.h.b16 %v73
    %v211 = vunpack.c.l.b16 %v74
    %v212 = vunpack.c.h.b16 %v74
    %v213 = vunpack.c.l.b16 %v75
    %v214 = vunpack.c.h.b16 %v75
    %v215 = vunpack.c.l.b16 %v76
    %v216 = vunpack.c.h.b16 %v76
    %v217 = vunpack.c.l.b16 %v77
    %v218 = vunpack.c.h.b16 %v77
    %v219 = vunpack.c.l.b16 %v78
    %v220 = vunpack.c.h.b16 %v78
    %v221 = vunpack.c.l.b16 %v79
    %v222 = vunpack.c.h.b16 %v79
    %v223 = vunpack.c.l.b16 %v80
    %v224 = vunpack.c.h.b16 %v80
    %v225 = vunpack.c.l.b16 %v81
    %v226 = vunpack.c.h.b16 %v81
    %v227 = vunpack.c.l.b16 %v82
    %v228 = vunpack.c.h.b16 %v82
    %v229 = vunpack.c.l.b16 %v83
    %v230 = vunpack.c.h.b16 %v83
    %v231 = vunpack.c.l.b16 %v84
    %v232 = vunpack.c.h.b16 %v84
    %v233 = vunpack.c.l.b16 %v85
    %v234 = vunpack.c.h.b16 %v85
    %v235 = vunpack.c.l.b16 %v86
    %v236 = vunpack.c.h.b16 %v86
    %v237 = vunpack.c.l.b16 %v87
    %v238 = vunpack.c.h.b16 %v87
    %v239 = vunpack.c.l.b16 %v88
    %v240 = vunpack.c.h.b16 %v88
    %v241 = vunpack.c.l.b16 %v89
    %v242 = vunpack.c.h.b16 %v89
    %v243 = vunpack.c.l.b16 %v90
    %v244 = vunpack.c.h.b16 %v90
    %v245 = vunpack.c.l.b16 %v91
    %v246 = vunpack.c.h.b16 %v91
    %v247 = vunpack.c.l.b16 %v92
    %v248 = vunpack.c.h.b16 %v92
    %v249 = vunpack.c.l.b16 %v93
    %v250 = vunpack.c.h.b16 %v93
    %v251 = vunpack.c.l.b16 %v94
    %v252 = vunpack.c.h.b16 %v94
    %v253 = vunpack.c.l.b16 %v95
    %v254 = vunpack.c.h.b16 %v95
    %v255 = vunpack.c.l.b16 %v96
    %v256 = vunpack.c.h.b16 %v96
    %v257 = vunpack.c.l.b16 %v97
    %v258 = vunpack.c.h.b16 %v97
    %v259 = vunpack.c.l.b16 %v98
    %v260 = vunpack.c.h.b16 %v98
    %v261 = vunpack.c.l.b16 %v99
    %v262 = vunpack.c.h.b16 %v99
    %v263 = vunpack.c.l.b16 %v100
    %v264 = vunpack.c.h.b16 %v100
    %v265 = vunpack.c.l.b16 %v101
    %v266 = vunpack.c.h.b16 %v101
    %v267 = vunpack.c.l.b16 %v102
    %v268 = vunpack.c.h.b16 %v102
    %v269 = vunpack.c.l.b16 %v103
    %v270 = vunpack.c.h.b16 %v103
    %v271 = vunpack.c.l.b16 %v104
    %v272 = vunpack.c.h.b16 %v104
    %v273 = vunpack.c.l.b16 %v105
    %v274 = vunpack.c.h.b16 %v105
    %v275 = vunpack.c.l.b16 %v106
    %v276 = vunpack.c.h.b16 %v106
    %v277 = vunpack.c.l.b16 %v107
    %v278 = vunpack.c.h.b16 %v107
    %v279 = vunpack.c.l.b16 %v108
    %v280 = vunpack.c.h.b16 %v108
    %v281 = vpack.c.b16 %v185, %v181
    %v282 = vpack.c.b16 %v186, %v182
    %v283 = vpack.c.b16 %v187, %v183
    %v284 = vpack.c.b16 %v188, %v184
    %v285 = vpack.c.b16 %v193, %v189
    %v286 = vpack.c.b16 %v194, %v190
    %v287 = vpack.c.b16 %v195, %v191
    %v288 = vpack.c.b16 %v196, %v192
    %v289 = vpack.c.b16 %v201, %v197
    %v290 = vpack.c.b16 %v202, %v198
    %v291 = vpack.c.b16 %v203, %v199
    %v292 = vpack.c.b16 %v204, %v200
    %v293 = vpack.c.b16 %v209, %v205
    %v294 = vpack.c.b16 %v210, %v206
    %v295 = vpack.c.b16 %v211, %v207
    %v296 = vpack.c.b16 %v212, %v208
    %v297 = vpack.c.b16 %v217, %v213
    %v298 = vpack.c.b16 %v218, %v214
    %v299 = vpack.c.b16 %v219, %v215
    %v300 = vpack.c.b16 %v220, %v216
    %v301 = vpack.c.b16 %v225, %v221
    %v302 = vpack.c.b16 %v226, %v222
    %v303 = vpack.c.b16 %v227, %v223
    %v304 = vpack.c.b16 %v228, %v224
    %v305 = vpack.c.b16 %v233, %v229
    %v306 = vpack.c.b16 %v234, %v230
    %v307 = vpack.c.b16 %v235, %v231
    %v308 = vpack.c.b16 %v236, %v232
    %v309 = vpack.c.b16 %v241, %v237
    %v310 = vpack.c.b16 %v242, %v238
    %v311 = vpack.c.b16 %v243, %v239
    %v312 = vpack.c.b16 %v244, %v240
    %v313 = vpack.c.b16 %v249, %v245
    %v314 = vpack.c.b16 %v250, %v246
    %v315 = vpack.c.b16 %v251, %v247
    %v316 = vpack.c.b16 %v252, %v248
    %v317 = vpack.c.b16 %v257, %v253
    %v318 = vpack.c.b16 %v258, %v254
    %v319 = vpack.c.b16 %v259, %v255
    %v320 = vpack.c.b16 %v260, %v256
    %v321 = vpack.c.b16 %v265, %v261
    %v322 = vpack.c.b16 %v266, %v262
    %v323 = vpack.c.b16 %v267, %v263
    %v324 = vpack.c.b16 %v268, %v264
    %v325 = vpack.c.b16 %v273, %v269
    %v326 = vpack.c.b16 %v274, %v270
    %v327 = vpack.c.b16 %v275, %v271
    %v328 = vpack.c.b16 %v276, %v272
    %v329 = vpack.c.b16 %v277, %v277
    %v330 = vpack.c.b16 %v278, %v278
    %v331 = vpack.c.b16 %v279, %v279
    %v332 = vpack.c.b16 %v280, %v280
    %vm381 = vcmask 588800
    %v383 = vsel %vm381, %v58, 0
    %vm385 = vcmask 1043456
    %v387 = vsel %vm385, %v329, 0
    %v390 = vsel %vm385, %v330, 0
    %v393 = vsel %vm385, %v331, 0
    %v396 = vsel %vm385, %v332, 0
    %398 = vmatprep.subr.bf16.mxu0 %v310
    %399 = vmatpush1.bf16.msra.mxu0 %v309
    %400 = vmatprep.subr.bf16.mxu0 %v306
    %401 = vmatpush1.bf16.msra.mxu0 %v305
    %402 = vmatprep.subr.bf16.mxu0 %v302
    %403 = vmatpush1.bf16.msra.mxu0 %v301
    %404 = vmatprep.subr.bf16.mxu0 %v298
    %405 = vmatpush1.bf16.msra.mxu0 %v297
    %406 = vmatprep.subr.bf16.mxu0 %v294
    %407 = vmatpush1.bf16.msra.mxu0 %v293
    %408 = vmatprep.subr.bf16.mxu0 %v290
    %409 = vmatpush1.bf16.msra.mxu0 %v289
    %410 = vmatprep.subr.bf16.mxu0 %v286
    %411 = vmatpush1.bf16.msra.mxu0 %v285
    %412 = vmatprep.subr.bf16.mxu0 %v282
    %413 = vmatpush1.bf16.msra.mxu0 %v281
    %414 = vmatprep.subr.bf16.mxu0 0
    %415 = vmatpush2.bf16.msra.mxu0 0
    %416 = vmatprep.subr.bf16.mxu0 0
    %417 = vmatpush2.bf16.msra.mxu0 0
    %418 = vmatprep.subr.bf16.mxu0 0
    %419 = vmatpush2.bf16.msra.mxu0 0
    %420 = vmatprep.subr.bf16.mxu0 %v390
    %421 = vmatpush2.bf16.msra.mxu0 %v387
    %422 = vmatprep.subr.bf16.mxu0 %v326
    %423 = vmatpush2.bf16.msra.mxu0 %v325
    %424 = vmatprep.subr.bf16.mxu0 %v322
    %425 = vmatpush2.bf16.msra.mxu0 %v321
    %426 = vmatprep.subr.bf16.mxu0 %v318
    %427 = vmatpush2.bf16.msra.mxu0 %v317
    %428 = vmatprep.subr.bf16.mxu0 %v314
    %429 = vmatpush2.bf16.msra.mxu0 %v313
    %430 = vmatprep.mubr.bf16.mxu0 %v383
    %431 = vmatmul.mubr.bf16.gmra.mxu0 %v57
    %v432 = vpop.f32.mrf.mxu0
    %v433 = vadd.f32 %v114, %v432
    %v434 = vpop.f32.mrf.mxu0
    %v435 = vadd.f32 %v118, %v434
    %v436 = vpop.f32.mrf.mxu0
    %v437 = vpop.f32.mrf.mxu0
    %438 = vdwg.mxu0
    %439 = vmatprep.subr.bf16.mxu0 %v312
    %440 = vmatpush1.bf16.msra.mxu0 %v311
    %441 = vmatprep.subr.bf16.mxu0 %v308
    %442 = vmatpush1.bf16.msra.mxu0 %v307
    %443 = vmatprep.subr.bf16.mxu0 %v304
    %444 = vmatpush1.bf16.msra.mxu0 %v303
    %445 = vmatprep.subr.bf16.mxu0 %v300
    %446 = vmatpush1.bf16.msra.mxu0 %v299
    %447 = vmatprep.subr.bf16.mxu0 %v296
    %448 = vmatpush1.bf16.msra.mxu0 %v295
    %449 = vmatprep.subr.bf16.mxu0 %v292
    %450 = vmatpush1.bf16.msra.mxu0 %v291
    %451 = vmatprep.subr.bf16.mxu0 %v288
    %452 = vmatpush1.bf16.msra.mxu0 %v287
    %453 = vmatprep.subr.bf16.mxu0 %v284
    %454 = vmatpush1.bf16.msra.mxu0 %v283
    %455 = vmatprep.subr.bf16.mxu0 0
    %456 = vmatpush2.bf16.msra.mxu0 0
    %457 = vmatprep.subr.bf16.mxu0 0
    %458 = vmatpush2.bf16.msra.mxu0 0
    %459 = vmatprep.subr.bf16.mxu0 0
    %460 = vmatpush2.bf16.msra.mxu0 0
    %461 = vmatprep.subr.bf16.mxu0 %v396
    %462 = vmatpush2.bf16.msra.mxu0 %v393
    %463 = vmatprep.subr.bf16.mxu0 %v328
    %464 = vmatpush2.bf16.msra.mxu0 %v327
    %465 = vmatprep.subr.bf16.mxu0 %v324
    %466 = vmatpush2.bf16.msra.mxu0 %v323
    %467 = vmatprep.subr.bf16.mxu0 %v320
    %468 = vmatpush2.bf16.msra.mxu0 %v319
    %469 = vmatprep.subr.bf16.mxu0 %v316
    %470 = vmatpush2.bf16.msra.mxu0 %v315
    %471 = vmatprep.mubr.bf16.mxu0 %v383
    %472 = vmatmul.mubr.bf16.gmra.mxu0 %v57
    %v473 = vpop.f32.mrf.mxu0
    %v474 = vadd.f32 %v122, %v473
    %v475 = vpop.f32.mrf.mxu0
    %v476 = vadd.f32 %v126, %v475
    %v477 = vpop.f32.mrf.mxu0
    %v478 = vpop.f32.mrf.mxu0
    %479 = vdwg.mxu0
    %v480 = vmul.f32 %v433, 0.5
    %v481 = vmul.f32 %v435, 0.5
    %v482 = vmul.f32 %v474, 0.5
    %v483 = vmul.f32 %v476, 0.5
    %v484 = vmul.f32 %v433, %v433
    %v485 = vmul.f32 %v435, %v435
    %v486 = vmul.f32 %v474, %v474
    %v487 = vmul.f32 %v476, %v476
    %v488 = vmul.f32 %v484, %v433
    %v489 = vmul.f32 %v485, %v435
    %v490 = vmul.f32 %v486, %v474
    %v491 = vmul.f32 %v487, %v476
    %v492 = vmul.f32 %v488, 0.044715
    %v493 = vmul.f32 %v489, 0.044715
    %v494 = vmul.f32 %v490, 0.044715
    %v495 = vmul.f32 %v491, 0.044715
    %v496 = vadd.f32 %v433, %v492
    %v497 = vadd.f32 %v435, %v493
    %v498 = vadd.f32 %v474, %v494
    %v499 = vadd.f32 %v476, %v495
    %v500 = vmul.f32 %v496, 0.7978846
    %v501 = vmul.f32 %v497, 0.7978846
    %v502 = vmul.f32 %v498, 0.7978846
    %v503 = vmul.f32 %v499, 0.7978846
    %v504 = vtanh.pop %v500
    %v505 = vtanh.pop %v501
    %v506 = vtanh.pop %v502
    %v507 = vtanh.pop %v503
    %v508 = vadd.f32 %v504, 1.0
    %v509 = vadd.f32 %v505, 1.0
    %v510 = vadd.f32 %v506, 1.0
    %v511 = vadd.f32 %v507, 1.0
    %v512 = vmul.f32 %v480, %v508
    %v513 = vmul.f32 %v481, %v509
    %v514 = vmul.f32 %v482, %v510
    %v515 = vmul.f32 %v483, %v511
    %v516 = vpack.c.bf16 %v512, %v512
    %v517 = vpack.c.bf16 %v513, %v513
    %v518 = vpack.c.bf16 %v514, %v514
    %v519 = vpack.c.bf16 %v515, %v515
    %v520 = vld [vmem:[#allocation4] sm:$0xff]
    %v521 = vld [vmem:[#allocation4 + $0x8] sm:$0xff]
    %v522 = vld [vmem:[#allocation4 + $0x10] sm:$0xff]
    %v523 = vld [vmem:[#allocation4 + $0x18] sm:$0xff]
    %v524 = vld [vmem:[#allocation4 + $0x20] sm:$0xff]
    %v525 = vld [vmem:[#allocation4 + $0x28] sm:$0xff]
    %v526 = vld [vmem:[#allocation4 + $0x30] sm:$0xff]
    %v527 = vld [vmem:[#allocation4 + $0x38] sm:$0xff]
    %v528 = vld [vmem:[#allocation4 + $0x40] sm:$0xff]
    %v529 = vld [vmem:[#allocation4 + $0x48] sm:$0xff]
    %v530 = vld [vmem:[#allocation4 + $0x50] sm:$0xff]
    %v531 = vld [vmem:[#allocation4 + $0x58] sm:$0xff]
    %v532 = vld [vmem:[#allocation4 + $0x60] sm:$0xff]
    %v533 = vld [vmem:[#allocation4 + $0x68] sm:$0xff]
    %v534 = vld [vmem:[#allocation4 + $0x70] sm:$0xff]
    %v535 = vld [vmem:[#allocation4 + $0x78] sm:$0xff]
    %v536 = vld [vmem:[#allocation4 + $0x80] sm:$0xff]
    %v537 = vld [vmem:[#allocation4 + $0x88] sm:$0xff]
    %v538 = vld [vmem:[#allocation4 + $0x90] sm:$0xff]
    %v539 = vld [vmem:[#allocation4 + $0x98] sm:$0xff]
    %v540 = vld [vmem:[#allocation4 + $0xa0] sm:$0xff]
    %v541 = vld [vmem:[#allocation4 + $0xa8] sm:$0xff]
    %v542 = vld [vmem:[#allocation4 + $0xb0] sm:$0xff]
    %v543 = vld [vmem:[#allocation4 + $0xb8] sm:$0xff]
    %v544 = vld [vmem:[#allocation4 + $0xc0] sm:$0xff]
    %v545 = vld [vmem:[#allocation4 + $0xc8] sm:$0xff]
    %v546 = vld [vmem:[#allocation4 + $0xd0] sm:$0xff]
    %v547 = vld [vmem:[#allocation4 + $0xd8] sm:$0xff]
    %v548 = vld [vmem:[#allocation4 + $0xe0] sm:$0xff]
    %v549 = vld [vmem:[#allocation4 + $0xe8] sm:$0xff]
    %v550 = vld [vmem:[#allocation4 + $0xf0] sm:$0xff]
    %v551 = vld [vmem:[#allocation4 + $0xf8] sm:$0xff]
    %v552 = vld [vmem:[#allocation4 + $0x100] sm:$0xff]
    %v553 = vld [vmem:[#allocation4 + $0x108] sm:$0xff]
    %v554 = vld [vmem:[#allocation4 + $0x110] sm:$0xff]
    %v555 = vld [vmem:[#allocation4 + $0x118] sm:$0xff]
    %v556 = vld [vmem:[#allocation4 + $0x120] sm:$0xff]
    %v557 = vld [vmem:[#allocation4 + $0x128] sm:$0xff]
    %v558 = vld [vmem:[#allocation4 + $0x130] sm:$0xff]
    %v559 = vld [vmem:[#allocation4 + $0x138] sm:$0xff]
    %v560 = vld [vmem:[#allocation4 + $0x140] sm:$0xff]
    %v561 = vld [vmem:[#allocation4 + $0x148] sm:$0xff]
    %v562 = vld [vmem:[#allocation4 + $0x150] sm:$0xff]
    %v563 = vld [vmem:[#allocation4 + $0x158] sm:$0xff]
    %v564 = vld [vmem:[#allocation4 + $0x160] sm:$0xff]
    %v565 = vld [vmem:[#allocation4 + $0x168] sm:$0xff]
    %v566 = vld [vmem:[#allocation4 + $0x170] sm:$0xff]
    %v567 = vld [vmem:[#allocation4 + $0x178] sm:$0xff]
    %v568 = vld [vmem:[#allocation4 + $0x180] sm:$0xff]
    %v569 = vld [vmem:[#allocation4 + $0x188] sm:$0xff]
    %v570 = vld [vmem:[#allocation4 + $0x190] sm:$0xff]
    %v571 = vld [vmem:[#allocation4 + $0x198] sm:$0xff]
    %v572 = vld [vmem:[#allocation4 + $0x1a0] sm:$0xff]
    %v573 = vld [vmem:[#allocation4 + $0x1a8] sm:$0xff]
    %v574 = vld [vmem:[#allocation4 + $0x1b0] sm:$0xff]
    %v575 = vld [vmem:[#allocation4 + $0x1b8] sm:$0xff]
    %v576 = vld [vmem:[#allocation4 + $0x1c0] sm:$0xff]
    %v577 = vld [vmem:[#allocation4 + $0x1c8] sm:$0xff]
    %v578 = vld [vmem:[#allocation4 + $0x1d0] sm:$0xff]
    %v579 = vld [vmem:[#allocation4 + $0x1d8] sm:$0xff]
    %v580 = vld [vmem:[#allocation4 + $0x1e0] sm:$0xff]
    %v581 = vld [vmem:[#allocation4 + $0x1e8] sm:$0xff]
    %v582 = vld [vmem:[#allocation4 + $0x1f0] sm:$0xff]
    %v583 = vld [vmem:[#allocation4 + $0x1f8] sm:$0xff]
    %s584 = scalar_lea.vmem %s6, 1
    %v585 = vld [vmem:[%s584] ss:$8 sm:$0x3]
    %v587 = vlaneseq
    %v588 = vshrl.u32 %v587, 7
    %v589 = vsub.s32 0, %v588
    %v590 = vrot.slane %v585, %v589
    %v591 = vlaneseq
    %v592 = vshrl.u32 %v591, 7
    %v593 = vsub.s32 1, %v592
    %v594 = vrot.slane %v585, %v593
    %v661 = vunpack.c.l.b16 %v520
    %v662 = vunpack.c.h.b16 %v520
    %v663 = vunpack.c.l.b16 %v521
    %v664 = vunpack.c.h.b16 %v521
    %v665 = vunpack.c.l.b16 %v522
    %v666 = vunpack.c.h.b16 %v522
    %v667 = vunpack.c.l.b16 %v523
    %v668 = vunpack.c.h.b16 %v523
    %v669 = vunpack.c.l.b16 %v524
    %v670 = vunpack.c.h.b16 %v524
    %v671 = vunpack.c.l.b16 %v525
    %v672 = vunpack.c.h.b16 %v525
    %v673 = vunpack.c.l.b16 %v526
    %v674 = vunpack.c.h.b16 %v526
    %v675 = vunpack.c.l.b16 %v527
    %v676 = vunpack.c.h.b16 %v527
    %v677 = vunpack.c.l.b16 %v528
    %v678 = vunpack.c.h.b16 %v528
    %v679 = vunpack.c.l.b16 %v529
    %v680 = vunpack.c.h.b16 %v529
    %v681 = vunpack.c.l.b16 %v530
    %v682 = vunpack.c.h.b16 %v530
    %v683 = vunpack.c.l.b16 %v531
    %v684 = vunpack.c.h.b16 %v531
    %v685 = vunpack.c.l.b16 %v532
    %v686 = vunpack.c.h.b16 %v532
    %v687 = vunpack.c.l.b16 %v533
    %v688 = vunpack.c.h.b16 %v533
    %v689 = vunpack.c.l.b16 %v534
    %v690 = vunpack.c.h.b16 %v534
    %v691 = vunpack.c.l.b16 %v535
    %v692 = vunpack.c.h.b16 %v535
    %v693 = vunpack.c.l.b16 %v536
    %v694 = vunpack.c.h.b16 %v536
    %v695 = vunpack.c.l.b16 %v537
    %v696 = vunpack.c.h.b16 %v537
    %v697 = vunpack.c.l.b16 %v538
    %v698 = vunpack.c.h.b16 %v538
    %v699 = vunpack.c.l.b16 %v539
    %v700 = vunpack.c.h.b16 %v539
    %v701 = vunpack.c.l.b16 %v540
    %v702 = vunpack.c.h.b16 %v540
    %v703 = vunpack.c.l.b16 %v541
    %v704 = vunpack.c.h.b16 %v541
    %v705 = vunpack.c.l.b16 %v542
    %v706 = vunpack.c.h.b16 %v542
    %v707 = vunpack.c.l.b16 %v543
    %v708 = vunpack.c.h.b16 %v543
    %v709 = vunpack.c.l.b16 %v544
    %v710 = vunpack.c.h.b16 %v544
    %v711 = vunpack.c.l.b16 %v545
    %v712 = vunpack.c.h.b16 %v545
    %v713 = vunpack.c.l.b16 %v546
    %v714 = vunpack.c.h.b16 %v546
    %v715 = vunpack.c.l.b16 %v547
    %v716 = vunpack.c.h.b16 %v547
    %v717 = vunpack.c.l.b16 %v548
    %v718 = vunpack.c.h.b16 %v548
    %v719 = vunpack.c.l.b16 %v549
    %v720 = vunpack.c.h.b16 %v549
    %v721 = vunpack.c.l.b16 %v550
    %v722 = vunpack.c.h.b16 %v550
    %v723 = vunpack.c.l.b16 %v551
    %v724 = vunpack.c.h.b16 %v551
    %v725 = vunpack.c.l.b16 %v552
    %v726 = vunpack.c.h.b16 %v552
    %v727 = vunpack.c.l.b16 %v553
    %v728 = vunpack.c.h.b16 %v553
    %v729 = vunpack.c.l.b16 %v554
    %v730 = vunpack.c.h.b16 %v554
    %v731 = vunpack.c.l.b16 %v555
    %v732 = vunpack.c.h.b16 %v555
    %v733 = vunpack.c.l.b16 %v556
    %v734 = vunpack.c.h.b16 %v556
    %v735 = vunpack.c.l.b16 %v557
    %v736 = vunpack.c.h.b16 %v557
    %v737 = vunpack.c.l.b16 %v558
    %v738 = vunpack.c.h.b16 %v558
    %v739 = vunpack.c.l.b16 %v559
    %v740 = vunpack.c.h.b16 %v559
    %v741 = vunpack.c.l.b16 %v560
    %v742 = vunpack.c.h.b16 %v560
    %v743 = vunpack.c.l.b16 %v561
    %v744 = vunpack.c.h.b16 %v561
    %v745 = vunpack.c.l.b16 %v562
    %v746 = vunpack.c.h.b16 %v562
    %v747 = vunpack.c.l.b16 %v563
    %v748 = vunpack.c.h.b16 %v563
    %v749 = vunpack.c.l.b16 %v564
    %v750 = vunpack.c.h.b16 %v564
    %v751 = vunpack.c.l.b16 %v565
    %v752 = vunpack.c.h.b16 %v565
    %v753 = vunpack.c.l.b16 %v566
    %v754 = vunpack.c.h.b16 %v566
    %v755 = vunpack.c.l.b16 %v567
    %v756 = vunpack.c.h.b16 %v567
    %v757 = vunpack.c.l.b16 %v568
    %v758 = vunpack.c.h.b16 %v568
    %v759 = vunpack.c.l.b16 %v569
    %v760 = vunpack.c.h.b16 %v569
    %v761 = vunpack.c.l.b16 %v570
    %v762 = vunpack.c.h.b16 %v570
    %v763 = vunpack.c.l.b16 %v571
    %v764 = vunpack.c.h.b16 %v571
    %v765 = vunpack.c.l.b16 %v572
    %v766 = vunpack.c.h.b16 %v572
    %v767 = vunpack.c.l.b16 %v573
    %v768 = vunpack.c.h.b16 %v573
    %v769 = vunpack.c.l.b16 %v574
    %v770 = vunpack.c.h.b16 %v574
    %v771 = vunpack.c.l.b16 %v575
    %v772 = vunpack.c.h.b16 %v575
    %v773 = vunpack.c.l.b16 %v576
    %v774 = vunpack.c.h.b16 %v576
    %v775 = vunpack.c.l.b16 %v577
    %v776 = vunpack.c.h.b16 %v577
    %v777 = vunpack.c.l.b16 %v578
    %v778 = vunpack.c.h.b16 %v578
    %v779 = vunpack.c.l.b16 %v579
    %v780 = vunpack.c.h.b16 %v579
    %v781 = vunpack.c.l.b16 %v580
    %v782 = vunpack.c.h.b16 %v580
    %v783 = vunpack.c.l.b16 %v581
    %v784 = vunpack.c.h.b16 %v581
    %v785 = vunpack.c.l.b16 %v582
    %v786 = vunpack.c.h.b16 %v582
    %v787 = vunpack.c.l.b16 %v583
    %v788 = vunpack.c.h.b16 %v583
    %v789 = vpack.c.b16 %v663, %v661
    %v790 = vpack.c.b16 %v664, %v662
    %v791 = vpack.c.b16 %v667, %v665
    %v792 = vpack.c.b16 %v668, %v666
    %v793 = vpack.c.b16 %v671, %v669
    %v794 = vpack.c.b16 %v672, %v670
    %v795 = vpack.c.b16 %v675, %v673
    %v796 = vpack.c.b16 %v676, %v674
    %v797 = vpack.c.b16 %v679, %v677
    %v798 = vpack.c.b16 %v680, %v678
    %v799 = vpack.c.b16 %v683, %v681
    %v800 = vpack.c.b16 %v684, %v682
    %v801 = vpack.c.b16 %v687, %v685
    %v802 = vpack.c.b16 %v688, %v686
    %v803 = vpack.c.b16 %v691, %v689
    %v804 = vpack.c.b16 %v692, %v690
    %v805 = vpack.c.b16 %v695, %v693
    %v806 = vpack.c.b16 %v696, %v694
    %v807 = vpack.c.b16 %v699, %v697
    %v808 = vpack.c.b16 %v700, %v698
    %v809 = vpack.c.b16 %v703, %v701
    %v810 = vpack.c.b16 %v704, %v702
    %v811 = vpack.c.b16 %v707, %v705
    %v812 = vpack.c.b16 %v708, %v706
    %v813 = vpack.c.b16 %v711, %v709
    %v814 = vpack.c.b16 %v712, %v710
    %v815 = vpack.c.b16 %v715, %v713
    %v816 = vpack.c.b16 %v716, %v714
    %v817 = vpack.c.b16 %v719, %v717
    %v818 = vpack.c.b16 %v720, %v718
    %v819 = vpack.c.b16 %v723, %v721
    %v820 = vpack.c.b16 %v724, %v722
    %v821 = vpack.c.b16 %v727, %v725
    %v822 = vpack.c.b16 %v728, %v726
    %v823 = vpack.c.b16 %v731, %v729
    %v824 = vpack.c.b16 %v732, %v730
    %v825 = vpack.c.b16 %v735, %v733
    %v826 = vpack.c.b16 %v736, %v734
    %v827 = vpack.c.b16 %v739, %v737
    %v828 = vpack.c.b16 %v740, %v738
    %v829 = vpack.c.b16 %v743, %v741
    %v830 = vpack.c.b16 %v744, %v742
    %v831 = vpack.c.b16 %v747, %v745
    %v832 = vpack.c.b16 %v748, %v746
    %v833 = vpack.c.b16 %v751, %v749
    %v834 = vpack.c.b16 %v752, %v750
    %v835 = vpack.c.b16 %v755, %v753
    %v836 = vpack.c.b16 %v756, %v754
    %v837 = vpack.c.b16 %v759, %v757
    %v838 = vpack.c.b16 %v760, %v758
    %v839 = vpack.c.b16 %v763, %v761
    %v840 = vpack.c.b16 %v764, %v762
    %v841 = vpack.c.b16 %v767, %v765
    %v842 = vpack.c.b16 %v768, %v766
    %v843 = vpack.c.b16 %v771, %v769
    %v844 = vpack.c.b16 %v772, %v770
    %v845 = vpack.c.b16 %v775, %v773
    %v846 = vpack.c.b16 %v776, %v774
    %v847 = vpack.c.b16 %v779, %v777
    %v848 = vpack.c.b16 %v780, %v778
    %v849 = vpack.c.b16 %v783, %v781
    %v850 = vpack.c.b16 %v784, %v782
    %v851 = vpack.c.b16 %v787, %v785
    %v852 = vpack.c.b16 %v788, %v786
    %917 = vmatprep.subr.bf16.mxu0 %v804
    %918 = vmatpush1.bf16.msra.mxu0 %v803
    %919 = vmatprep.subr.bf16.mxu0 %v802
    %920 = vmatpush1.bf16.msra.mxu0 %v801
    %921 = vmatprep.subr.bf16.mxu0 %v800
    %922 = vmatpush1.bf16.msra.mxu0 %v799
    %923 = vmatprep.subr.bf16.mxu0 %v798
    %924 = vmatpush1.bf16.msra.mxu0 %v797
    %925 = vmatprep.subr.bf16.mxu0 %v796
    %926 = vmatpush1.bf16.msra.mxu0 %v795
    %927 = vmatprep.subr.bf16.mxu0 %v794
    %928 = vmatpush1.bf16.msra.mxu0 %v793
    %929 = vmatprep.subr.bf16.mxu0 %v792
    %930 = vmatpush1.bf16.msra.mxu0 %v791
    %931 = vmatprep.subr.bf16.mxu0 %v790
    %932 = vmatpush1.bf16.msra.mxu0 %v789
    %933 = vmatprep.subr.bf16.mxu0 %v820
    %934 = vmatpush2.bf16.msra.mxu0 %v819
    %935 = vmatprep.subr.bf16.mxu0 %v818
    %936 = vmatpush2.bf16.msra.mxu0 %v817
    %937 = vmatprep.subr.bf16.mxu0 %v816
    %938 = vmatpush2.bf16.msra.mxu0 %v815
    %939 = vmatprep.subr.bf16.mxu0 %v814
    %940 = vmatpush2.bf16.msra.mxu0 %v813
    %941 = vmatprep.subr.bf16.mxu0 %v812
    %942 = vmatpush2.bf16.msra.mxu0 %v811
    %943 = vmatprep.subr.bf16.mxu0 %v810
    %944 = vmatpush2.bf16.msra.mxu0 %v809
    %945 = vmatprep.subr.bf16.mxu0 %v808
    %946 = vmatpush2.bf16.msra.mxu0 %v807
    %947 = vmatprep.subr.bf16.mxu0 %v806
    %948 = vmatpush2.bf16.msra.mxu0 %v805
    %949 = vmatprep.mubr.bf16.mxu0 %v517
    %950 = vmatmul.mubr.bf16.gmra.mxu0 %v516
    %v951 = vpop.f32.mrf.mxu0
    %v952 = vadd.f32 %v590, %v951
    %v953 = vpop.f32.mrf.mxu0
    %v954 = vadd.f32 %v594, %v953
    %v955 = vpop.f32.mrf.mxu0
    %v956 = vpop.f32.mrf.mxu0
    %957 = vdwg.mxu0
    %958 = vmatprep.subr.bf16.mxu0 %v836
    %959 = vmatpush1.bf16.msra.mxu0 %v835
    %960 = vmatprep.subr.bf16.mxu0 %v834
    %961 = vmatpush1.bf16.msra.mxu0 %v833
    %962 = vmatprep.subr.bf16.mxu0 %v832
    %963 = vmatpush1.bf16.msra.mxu0 %v831
    %964 = vmatprep.subr.bf16.mxu0 %v830
    %965 = vmatpush1.bf16.msra.mxu0 %v829
    %966 = vmatprep.subr.bf16.mxu0 %v828
    %967 = vmatpush1.bf16.msra.mxu0 %v827
    %968 = vmatprep.subr.bf16.mxu0 %v826
    %969 = vmatpush1.bf16.msra.mxu0 %v825
    %970 = vmatprep.subr.bf16.mxu0 %v824
    %971 = vmatpush1.bf16.msra.mxu0 %v823
    %972 = vmatprep.subr.bf16.mxu0 %v822
    %973 = vmatpush1.bf16.msra.mxu0 %v821
    %974 = vmatprep.subr.bf16.mxu0 %v852
    %975 = vmatpush2.bf16.msra.mxu0 %v851
    %976 = vmatprep.subr.bf16.mxu0 %v850
    %977 = vmatpush2.bf16.msra.mxu0 %v849
    %978 = vmatprep.subr.bf16.mxu0 %v848
    %979 = vmatpush2.bf16.msra.mxu0 %v847
    %980 = vmatprep.subr.bf16.mxu0 %v846
    %981 = vmatpush2.bf16.msra.mxu0 %v845
    %982 = vmatprep.subr.bf16.mxu0 %v844
    %983 = vmatpush2.bf16.msra.mxu0 %v843
    %984 = vmatprep.subr.bf16.mxu0 %v842
    %985 = vmatpush2.bf16.msra.mxu0 %v841
    %986 = vmatprep.subr.bf16.mxu0 %v840
    %987 = vmatpush2.bf16.msra.mxu0 %v839
    %988 = vmatprep.subr.bf16.mxu0 %v838
    %989 = vmatpush2.bf16.msra.mxu0 %v837
    %990 = vmatprep.mubr.bf16.mxu0 %v519
    %991 = vmatmul.mubr.bf16.gmra.mxu0 %v518
    %v992 = vpop.f32.mrf.mxu0
    %v993 = vadd.f32 %v952, %v992
    %v994 = vpop.f32.mrf.mxu0
    %v995 = vadd.f32 %v954, %v994
    %v996 = vpop.f32.mrf.mxu0
    %v997 = vpop.f32.mrf.mxu0
    %998 = vdwg.mxu0
    %v999 = vmul.f32 %v993, 0.5
    %v1000 = vmul.f32 %v995, 0.5
    %v1001 = vmul.f32 %v993, %v993
    %v1002 = vmul.f32 %v995, %v995
    %v1003 = vmul.f32 %v1001, %v993
    %v1004 = vmul.f32 %v1002, %v995
    %v1005 = vmul.f32 %v1003, 0.044715
    %v1006 = vmul.f32 %v1004, 0.044715
    %v1007 = vadd.f32 %v993, %v1005
    %v1008 = vadd.f32 %v995, %v1006
    %v1009 = vmul.f32 %v1007, 0.7978846
    %v1010 = vmul.f32 %v1008, 0.7978846
    %v1011 = vtanh.pop %v1009
    %v1012 = vtanh.pop %v1010
    %v1013 = vadd.f32 %v1011, 1.0
    %v1014 = vadd.f32 %v1012, 1.0
    %v1015 = vmul.f32 %v999, %v1013
    %v1016 = vmul.f32 %v1000, %v1014
    %v1017 = vpack.c.bf16 %v1015, %v1015
    %v1018 = vpack.c.bf16 %v1016, %v1016
    %v1019 = vld [vmem:[%s4] sm:$0xf]
    %v1020 = vld [vmem:[%s4 + $0x4] sm:$0xf]
    %v1021 = vld [vmem:[%s4 + $0x8] sm:$0xf]
    %v1022 = vld [vmem:[%s4 + $0xc] sm:$0xf]
    %v1023 = vld [vmem:[%s4 + $0x10] sm:$0xf]
    %v1024 = vld [vmem:[%s4 + $0x14] sm:$0xf]
    %v1025 = vld [vmem:[%s4 + $0x18] sm:$0xf]
    %v1026 = vld [vmem:[%s4 + $0x1c] sm:$0xf]
    %v1027 = vld [vmem:[%s4 + $0x20] sm:$0xf]
    %v1028 = vld [vmem:[%s4 + $0x24] sm:$0xf]
    %v1029 = vld [vmem:[%s4 + $0x28] sm:$0xf]
    %v1030 = vld [vmem:[%s4 + $0x2c] sm:$0xf]
    %v1031 = vld [vmem:[%s4 + $0x30] sm:$0xf]
    %v1032 = vld [vmem:[%s4 + $0x34] sm:$0xf]
    %v1033 = vld [vmem:[%s4 + $0x38] sm:$0xf]
    %v1034 = vld [vmem:[%s4 + $0x3c] sm:$0xf]
    %v1035 = vld [vmem:[%s4 + $0x40] sm:$0xf]
    %v1036 = vld [vmem:[%s4 + $0x44] sm:$0xf]
    %v1037 = vld [vmem:[%s4 + $0x48] sm:$0xf]
    %v1038 = vld [vmem:[%s4 + $0x4c] sm:$0xf]
    %v1039 = vld [vmem:[%s4 + $0x50] sm:$0xf]
    %v1040 = vld [vmem:[%s4 + $0x54] sm:$0xf]
    %v1041 = vld [vmem:[%s4 + $0x58] sm:$0xf]
    %v1042 = vld [vmem:[%s4 + $0x5c] sm:$0xf]
    %v1043 = vld [vmem:[%s4 + $0x60] sm:$0xf]
    %v1044 = vld [vmem:[%s4 + $0x64] sm:$0xf]
    %v1045 = vld [vmem:[%s4 + $0x68] sm:$0xf]
    %v1046 = vld [vmem:[%s4 + $0x6c] sm:$0xf]
    %v1047 = vld [vmem:[%s4 + $0x70] sm:$0xf]
    %v1048 = vld [vmem:[%s4 + $0x74] sm:$0xf]
    %v1049 = vld [vmem:[%s4 + $0x78] sm:$0xf]
    %v1050 = vld [vmem:[%s4 + $0x7c] sm:$0xf]
    %v1051 = vld [vmem:[%s6 + $0x2] ss:$0 sm:$0xff]
    %v1084 = vunpack.c.l.b16 %v1019
    %v1085 = vunpack.c.l.b16 %v1020
    %v1086 = vunpack.c.l.b16 %v1021
    %v1087 = vunpack.c.l.b16 %v1022
    %v1088 = vunpack.c.l.b16 %v1023
    %v1089 = vunpack.c.l.b16 %v1024
    %v1090 = vunpack.c.l.b16 %v1025
    %v1091 = vunpack.c.l.b16 %v1026
    %v1092 = vunpack.c.l.b16 %v1027
    %v1093 = vunpack.c.l.b16 %v1028
    %v1094 = vunpack.c.l.b16 %v1029
    %v1095 = vunpack.c.l.b16 %v1030
    %v1096 = vunpack.c.l.b16 %v1031
    %v1097 = vunpack.c.l.b16 %v1032
    %v1098 = vunpack.c.l.b16 %v1033
    %v1099 = vunpack.c.l.b16 %v1034
    %v1100 = vunpack.c.l.b16 %v1035
    %v1101 = vunpack.c.l.b16 %v1036
    %v1102 = vunpack.c.l.b16 %v1037
    %v1103 = vunpack.c.l.b16 %v1038
    %v1104 = vunpack.c.l.b16 %v1039
    %v1105 = vunpack.c.l.b16 %v1040
    %v1106 = vunpack.c.l.b16 %v1041
    %v1107 = vunpack.c.l.b16 %v1042
    %v1108 = vunpack.c.l.b16 %v1043
    %v1109 = vunpack.c.l.b16 %v1044
    %v1110 = vunpack.c.l.b16 %v1045
    %v1111 = vunpack.c.l.b16 %v1046
    %v1112 = vunpack.c.l.b16 %v1047
    %v1113 = vunpack.c.l.b16 %v1048
    %v1114 = vunpack.c.l.b16 %v1049
    %v1115 = vunpack.c.l.b16 %v1050
    %v1116 = vpack.c.b16 %v1085, %v1084
    %v1117 = vpack.c.b16 %v1087, %v1086
    %v1118 = vpack.c.b16 %v1089, %v1088
    %v1119 = vpack.c.b16 %v1091, %v1090
    %v1120 = vpack.c.b16 %v1093, %v1092
    %v1121 = vpack.c.b16 %v1095, %v1094
    %v1122 = vpack.c.b16 %v1097, %v1096
    %v1123 = vpack.c.b16 %v1099, %v1098
    %v1124 = vpack.c.b16 %v1101, %v1100
    %v1125 = vpack.c.b16 %v1103, %v1102
    %v1126 = vpack.c.b16 %v1105, %v1104
    %v1127 = vpack.c.b16 %v1107, %v1106
    %v1128 = vpack.c.b16 %v1109, %v1108
    %v1129 = vpack.c.b16 %v1111, %v1110
    %v1130 = vpack.c.b16 %v1113, %v1112
    %v1131 = vpack.c.b16 %v1115, %v1114
    %1148 = vmatprep.subr.bf16.mxu0 0
    %1149 = vmatpush1.bf16.msra.mxu0 %v1123
    %1150 = vmatprep.subr.bf16.mxu0 0
    %1151 = vmatpush1.bf16.msra.mxu0 %v1122
    %1152 = vmatprep.subr.bf16.mxu0 0
    %1153 = vmatpush1.bf16.msra.mxu0 %v1121
    %1154 = vmatprep.subr.bf16.mxu0 0
    %1155 = vmatpush1.bf16.msra.mxu0 %v1120
    %1156 = vmatprep.subr.bf16.mxu0 0
    %1157 = vmatpush1.bf16.msra.mxu0 %v1119
    %1158 = vmatprep.subr.bf16.mxu0 0
    %1159 = vmatpush1.bf16.msra.mxu0 %v1118
    %1160 = vmatprep.subr.bf16.mxu0 0
    %1161 = vmatpush1.bf16.msra.mxu0 %v1117
    %1162 = vmatprep.subr.bf16.mxu0 0
    %1163 = vmatpush1.bf16.msra.mxu0 %v1116
    %1164 = vmatprep.subr.bf16.mxu0 0
    %1165 = vmatpush2.bf16.msra.mxu0 %v1131
    %1166 = vmatprep.subr.bf16.mxu0 0
    %1167 = vmatpush2.bf16.msra.mxu0 %v1130
    %1168 = vmatprep.subr.bf16.mxu0 0
    %1169 = vmatpush2.bf16.msra.mxu0 %v1129
    %1170 = vmatprep.subr.bf16.mxu0 0
    %1171 = vmatpush2.bf16.msra.mxu0 %v1128
    %1172 = vmatprep.subr.bf16.mxu0 0
    %1173 = vmatpush2.bf16.msra.mxu0 %v1127
    %1174 = vmatprep.subr.bf16.mxu0 0
    %1175 = vmatpush2.bf16.msra.mxu0 %v1126
    %1176 = vmatprep.subr.bf16.mxu0 0
    %1177 = vmatpush2.bf16.msra.mxu0 %v1125
    %1178 = vmatprep.subr.bf16.mxu0 0
    %1179 = vmatpush2.bf16.msra.mxu0 %v1124
    %1180 = vmatprep.mubr.bf16.mxu0 %v1018
    %1181 = vmatmul.mubr.bf16.gmra.mxu0 %v1017
    %v1182 = vpop.f32.mrf.mxu0
    %v1183 = vadd.f32 %v1051, %v1182
    %v1184 = vpop.f32.mrf.mxu0
    %v1185 = vpop.f32.mrf.mxu0
    %v1186 = vpop.f32.mrf.mxu0
    %1187 = vdwg.mxu0
    %v1188 = vmul.f32 %v1183, 0.5
    %v1189 = vmul.f32 %v1183, %v1183
    %v1190 = vmul.f32 %v1189, %v1183
    %v1191 = vmul.f32 %v1190, 0.044715
    %v1192 = vadd.f32 %v1183, %v1191
    %v1193 = vmul.f32 %v1192, 0.7978846
    %v1194 = vtanh.pop %v1193
    %v1195 = vadd.f32 %v1194, 1.0
    %v1196 = vmul.f32 %v1188, %v1195
    %v1197 = vld [vmem:[%s1] sm:$0xff]
    %v1198 = vpack.c.bf16 %v1197, %v1197
    %v1199 = vld [vmem:[%s5] sm:$0xff]
    %v1200 = vpack.c.bf16 %v1199, %v1199
    %v1201 = vld [vmem:[%s6 + $0x3] ss:$0 sm:$0xff]
    %vm1202 = vcmask 64512
    %v1204 = vsel %vm1202, %v1198, 0
    %v1207 = vsel %vm385, %v1200, 0
    %1209 = vmatprep.subr.bf16.mxu0 0
    %1210 = vmatpush1.bf16.msra.mxu0 0
    %1211 = vmatprep.subr.bf16.mxu0 0
    %1212 = vmatpush1.bf16.msra.mxu0 0
    %1213 = vmatprep.subr.bf16.mxu0 0
    %1214 = vmatpush1.bf16.msra.mxu0 0
    %1215 = vmatprep.subr.bf16.mxu0 0
    %1216 = vmatpush1.bf16.msra.mxu0 0
    %1217 = vmatprep.subr.bf16.mxu0 0
    %1218 = vmatpush1.bf16.msra.mxu0 0
    %1219 = vmatprep.subr.bf16.mxu0 0
    %1220 = vmatpush1.bf16.msra.mxu0 0
    %1221 = vmatprep.subr.bf16.mxu0 0
    %1222 = vmatpush1.bf16.msra.mxu0 0
    %1223 = vmatprep.subr.bf16.mxu0 0
    %1224 = vmatpush1.bf16.msra.mxu0 %v1207
    %1225 = vmatprep.subr.bf16.mxu0 0
    %1226 = vmatpush2.bf16.msra.mxu0 0
    %1227 = vmatprep.subr.bf16.mxu0 0
    %1228 = vmatpush2.bf16.msra.mxu0 0
    %1229 = vmatprep.subr.bf16.mxu0 0
    %1230 = vmatpush2.bf16.msra.mxu0 0
    %1231 = vmatprep.subr.bf16.mxu0 0
    %1232 = vmatpush2.bf16.msra.mxu0 0
    %1233 = vmatprep.subr.bf16.mxu0 0
    %1234 = vmatpush2.bf16.msra.mxu0 0
    %1235 = vmatprep.subr.bf16.mxu0 0
    %1236 = vmatpush2.bf16.msra.mxu0 0
    %1237 = vmatprep.subr.bf16.mxu0 0
    %1238 = vmatpush2.bf16.msra.mxu0 0
    %1239 = vmatprep.subr.bf16.mxu0 0
    %1240 = vmatpush2.bf16.msra.mxu0 0
    %1241 = vmatprep.mubr.bf16.mxu0 0
    %1242 = vmatmul.mubr.bf16.gmra.mxu0 %v1204
    %v1243 = vpop.f32.mrf.mxu0
    %v1244 = vadd.f32 %v1201, %v1243
    %v1245 = vpop.f32.mrf.mxu0
    %v1246 = vpop.f32.mrf.mxu0
    %v1247 = vpop.f32.mrf.mxu0
    %1248 = vdwg.mxu0
    %v1249 = vmul.f32 %v1244, 0.5
    %v1250 = vmul.f32 %v1244, %v1244
    %v1251 = vmul.f32 %v1250, %v1244
    %v1252 = vmul.f32 %v1251, 0.044715
    %v1253 = vadd.f32 %v1244, %v1252
    %v1254 = vmul.f32 %v1253, 0.7978846
    %v1255 = vtanh.pop %v1254
    %v1256 = vadd.f32 %v1255, 1.0
    %v1257 = vmul.f32 %v1249, %v1256
    %v1258 = vpack.c.bf16 %v1257, %v1257
    %v1259 = vld [vmem:[%s5 + $0x8] sm:$0xff]
    %v1260 = vld [vmem:[%s5 + $0x10] sm:$0xff]
    %v1261 = vpack.c.bf16 %v1260, %v1259
    %v1262 = vld [vmem:[%s6 + $0x4] ss:$0 sm:$0xff]
    %vm1263 = vcmask 130048
    %v1265 = vsel %vm1263, %v1258, 0
    %1267 = vmatprep.subr.bf16.mxu0 0
    %1268 = vmatpush1.bf16.msra.mxu0 0
    %1269 = vmatprep.subr.bf16.mxu0 0
    %1270 = vmatpush1.bf16.msra.mxu0 0
    %1271 = vmatprep.subr.bf16.mxu0 0
    %1272 = vmatpush1.bf16.msra.mxu0 0
    %1273 = vmatprep.subr.bf16.mxu0 0
    %1274 = vmatpush1.bf16.msra.mxu0 0
    %1275 = vmatprep.subr.bf16.mxu0 0
    %1276 = vmatpush1.bf16.msra.mxu0 0
    %1277 = vmatprep.subr.bf16.mxu0 0
    %1278 = vmatpush1.bf16.msra.mxu0 0
    %1279 = vmatprep.subr.bf16.mxu0 0
    %1280 = vmatpush1.bf16.msra.mxu0 0
    %1281 = vmatprep.subr.bf16.mxu0 0
    %1282 = vmatpush1.bf16.msra.mxu0 %v1261
    %1283 = vmatprep.subr.bf16.mxu0 0
    %1284 = vmatpush2.bf16.msra.mxu0 0
    %1285 = vmatprep.subr.bf16.mxu0 0
    %1286 = vmatpush2.bf16.msra.mxu0 0
    %1287 = vmatprep.subr.bf16.mxu0 0
    %1288 = vmatpush2.bf16.msra.mxu0 0
    %1289 = vmatprep.subr.bf16.mxu0 0
    %1290 = vmatpush2.bf16.msra.mxu0 0
    %1291 = vmatprep.subr.bf16.mxu0 0
    %1292 = vmatpush2.bf16.msra.mxu0 0
    %1293 = vmatprep.subr.bf16.mxu0 0
    %1294 = vmatpush2.bf16.msra.mxu0 0
    %1295 = vmatprep.subr.bf16.mxu0 0
    %1296 = vmatpush2.bf16.msra.mxu0 0
    %1297 = vmatprep.subr.bf16.mxu0 0
    %1298 = vmatpush2.bf16.msra.mxu0 0
    %1299 = vmatprep.mubr.bf16.mxu0 0
    %1300 = vmatmul.mubr.bf16.gmra.mxu0 %v1265
    %v1301 = vpop.f32.mrf.mxu0
    %v1302 = vadd.f32 %v1262, %v1301
    %v1303 = vpop.f32.mrf.mxu0
    %v1304 = vpop.f32.mrf.mxu0
    %v1305 = vpop.f32.mrf.mxu0
    %1306 = vdwg.mxu0
    %v1307 = vmul.f32 %v1302, 0.5
    %v1308 = vmul.f32 %v1302, %v1302
    %v1309 = vmul.f32 %v1308, %v1302
    %v1310 = vmul.f32 %v1309, 0.044715
    %v1311 = vadd.f32 %v1302, %v1310
    %v1312 = vmul.f32 %v1311, 0.7978846
    %v1313 = vtanh.pop %v1312
    %v1314 = vadd.f32 %v1313, 1.0
    %v1315 = vmul.f32 %v1307, %v1314
    %v1316 = vadd.f32 %v1196, %v1315
    %v1317 = vpack.c.bf16 %v1316, %v1316
    %v1318 = vld [vmem:[%s5 + $0x18] sm:$0xff]
    %v1319 = vld [vmem:[%s5 + $0x20] sm:$0xff]
    %v1320 = vld [vmem:[%s5 + $0x28] sm:$0xff]
    %v1321 = vld [vmem:[%s5 + $0x30] sm:$0xff]
    %v1322 = vld [vmem:[%s5 + $0x38] sm:$0xff]
    %v1323 = vld [vmem:[%s5 + $0x40] sm:$0xff]
    %v1324 = vld [vmem:[%s5 + $0x48] sm:$0xff]
    %v1325 = vld [vmem:[%s5 + $0x50] sm:$0xff]
    %v1326 = vpack.c.bf16 %v1319, %v1318
    %v1327 = vpack.c.bf16 %v1321, %v1320
    %v1328 = vpack.c.bf16 %v1323, %v1322
    %v1329 = vpack.c.bf16 %v1325, %v1324
    %v1330 = vld [vmem:[%s6 + $0x5] ss:$0 sm:$0xff]
    %vm1331 = vcmask 523264
    %v1333 = vsel %vm1331, %v1317, 0
    %1335 = vmatprep.subr.bf16.mxu0 0
    %1336 = vmatpush1.bf16.msra.mxu0 0
    %1337 = vmatprep.subr.bf16.mxu0 0
    %1338 = vmatpush1.bf16.msra.mxu0 0
    %1339 = vmatprep.subr.bf16.mxu0 0
    %1340 = vmatpush1.bf16.msra.mxu0 0
    %1341 = vmatprep.subr.bf16.mxu0 0
    %1342 = vmatpush1.bf16.msra.mxu0 0
    %1343 = vmatprep.subr.bf16.mxu0 0
    %1344 = vmatpush1.bf16.msra.mxu0 %v1329
    %1345 = vmatprep.subr.bf16.mxu0 0
    %1346 = vmatpush1.bf16.msra.mxu0 %v1328
    %1347 = vmatprep.subr.bf16.mxu0 0
    %1348 = vmatpush1.bf16.msra.mxu0 %v1327
    %1349 = vmatprep.subr.bf16.mxu0 0
    %1350 = vmatpush1.bf16.msra.mxu0 %v1326
    %1351 = vmatprep.subr.bf16.mxu0 0
    %1352 = vmatpush2.bf16.msra.mxu0 0
    %1353 = vmatprep.subr.bf16.mxu0 0
    %1354 = vmatpush2.bf16.msra.mxu0 0
    %1355 = vmatprep.subr.bf16.mxu0 0
    %1356 = vmatpush2.bf16.msra.mxu0 0
    %1357 = vmatprep.subr.bf16.mxu0 0
    %1358 = vmatpush2.bf16.msra.mxu0 0
    %1359 = vmatprep.subr.bf16.mxu0 0
    %1360 = vmatpush2.bf16.msra.mxu0 0
    %1361 = vmatprep.subr.bf16.mxu0 0
    %1362 = vmatpush2.bf16.msra.mxu0 0
    %1363 = vmatprep.subr.bf16.mxu0 0
    %1364 = vmatpush2.bf16.msra.mxu0 0
    %1365 = vmatprep.subr.bf16.mxu0 0
    %1366 = vmatpush2.bf16.msra.mxu0 0
    %1367 = vmatprep.mubr.bf16.mxu0 0
    %1368 = vmatmul.mubr.bf16.gmra.mxu0 %v1333
    %v1369 = vpop.f32.mrf.mxu0
    %v1370 = vadd.f32 %v1330, %v1369
    %v1371 = vpop.f32.mrf.mxu0
    %v1372 = vpop.f32.mrf.mxu0
    %v1373 = vpop.f32.mrf.mxu0
    %1374 = vdwg.mxu0
    %vm1375 = vcmp.ge.f32.partialorder %v1370, 0.0
    %v1376 = vmul.f32 %v1370, 0.3
    %v1377 = vsel %vm1375, %v1370, %v1376
    %v1378 = vpack.c.bf16 %v1377, %v1377
    %v1379 = vld [vmem:[%s5 + $0x58] sm:$0xff]
    %v1380 = vld [vmem:[%s5 + $0x60] sm:$0xff]
    %v1381 = vld [vmem:[%s5 + $0x68] sm:$0xf]
    %v1382 = vpack.c.bf16 %v1380, %v1379
    %v1383 = vpack.c.bf16 %v1381, %v1381
    %v1384 = vld [vmem:[%s6 + $0x6] ss:$0 sm:$0xff]
    %vm1385 = vcmask 162816
    %v1387 = vsel %vm1385, %v1378, 0
    %vm1389 = vcmask 1041408
    %v1391 = vsel %vm1389, %v1383, 0
    %1393 = vmatprep.subr.bf16.mxu0 0
    %1394 = vmatpush1.bf16.msra.mxu0 0
    %1395 = vmatprep.subr.bf16.mxu0 0
    %1396 = vmatpush1.bf16.msra.mxu0 0
    %1397 = vmatprep.subr.bf16.mxu0 0
    %1398 = vmatpush1.bf16.msra.mxu0 0
    %1399 = vmatprep.subr.bf16.mxu0 0
    %1400 = vmatpush1.bf16.msra.mxu0 0
    %1401 = vmatprep.subr.bf16.mxu0 0
    %1402 = vmatpush1.bf16.msra.mxu0 0
    %1403 = vmatprep.subr.bf16.mxu0 0
    %1404 = vmatpush1.bf16.msra.mxu0 0
    %1405 = vmatprep.subr.bf16.mxu0 0
    %1406 = vmatpush1.bf16.msra.mxu0 %v1391
    %1407 = vmatprep.subr.bf16.mxu0 0
    %1408 = vmatpush1.bf16.msra.mxu0 %v1382
    %1409 = vmatprep.subr.bf16.mxu0 0
    %1410 = vmatpush2.bf16.msra.mxu0 0
    %1411 = vmatprep.subr.bf16.mxu0 0
    %1412 = vmatpush2.bf16.msra.mxu0 0
    %1413 = vmatprep.subr.bf16.mxu0 0
    %1414 = vmatpush2.bf16.msra.mxu0 0
    %1415 = vmatprep.subr.bf16.mxu0 0
    %1416 = vmatpush2.bf16.msra.mxu0 0
    %1417 = vmatprep.subr.bf16.mxu0 0
    %1418 = vmatpush2.bf16.msra.mxu0 0
    %1419 = vmatprep.subr.bf16.mxu0 0
    %1420 = vmatpush2.bf16.msra.mxu0 0
    %1421 = vmatprep.subr.bf16.mxu0 0
    %1422 = vmatpush2.bf16.msra.mxu0 0
    %1423 = vmatprep.subr.bf16.mxu0 0
    %1424 = vmatpush2.bf16.msra.mxu0 0
    %1425 = vmatprep.mubr.bf16.mxu0 0
    %1426 = vmatmul.mubr.bf16.gmra.mxu0 %v1387
    %v1427 = vpop.f32.mrf.mxu0
    %v1428 = vadd.f32 %v1384, %v1427
    %v1429 = vpop.f32.mrf.mxu0
    %v1430 = vpop.f32.mrf.mxu0
    %v1431 = vpop.f32.mrf.mxu0
    %1432 = vdwg.mxu0
    %v1433 = vmul.f32 %v1428, 0.5
    %v1434 = vmul.f32 %v1428, %v1428
    %v1435 = vmul.f32 %v1434, %v1428
    %v1436 = vmul.f32 %v1435, 0.044715
    %v1437 = vadd.f32 %v1428, %v1436
    %v1438 = vmul.f32 %v1437, 0.7978846
    %v1439 = vtanh.pop %v1438
    %v1440 = vadd.f32 %v1439, 1.0
    %v1441 = vmul.f32 %v1433, %v1440
    %v1442 = vpack.c.bf16 %v1441, %v1441
    %v1443 = vld [vmem:[%s5 + $0x70] sm:$0xff]
    %v1444 = vld [vmem:[%s5 + $0x78] sm:$0x3]
    %v1445 = vpack.c.bf16 %v1444, %v1443
    %v1446 = vld [vmem:[%s6 + $0x7] ss:$0 sm:$0xff]
    %vm1447 = vcmask 80896
    %v1449 = vsel %vm1447, %v1442, 0
    %vm1451 = vcmask 1044480
    %v1453 = vsel %vm1451, %v1445, 0
    %1455 = vmatprep.subr.bf16.mxu0 0
    %1456 = vmatpush1.bf16.msra.mxu0 0
    %1457 = vmatprep.subr.bf16.mxu0 0
    %1458 = vmatpush1.bf16.msra.mxu0 0
    %1459 = vmatprep.subr.bf16.mxu0 0
    %1460 = vmatpush1.bf16.msra.mxu0 0
    %1461 = vmatprep.subr.bf16.mxu0 0
    %1462 = vmatpush1.bf16.msra.mxu0 0
    %1463 = vmatprep.subr.bf16.mxu0 0
    %1464 = vmatpush1.bf16.msra.mxu0 0
    %1465 = vmatprep.subr.bf16.mxu0 0
    %1466 = vmatpush1.bf16.msra.mxu0 0
    %1467 = vmatprep.subr.bf16.mxu0 0
    %1468 = vmatpush1.bf16.msra.mxu0 0
    %1469 = vmatprep.subr.bf16.mxu0 0
    %1470 = vmatpush1.bf16.msra.mxu0 %v1453
    %1471 = vmatprep.subr.bf16.mxu0 0
    %1472 = vmatpush2.bf16.msra.mxu0 0
    %1473 = vmatprep.subr.bf16.mxu0 0
    %1474 = vmatpush2.bf16.msra.mxu0 0
    %1475 = vmatprep.subr.bf16.mxu0 0
    %1476 = vmatpush2.bf16.msra.mxu0 0
    %1477 = vmatprep.subr.bf16.mxu0 0
    %1478 = vmatpush2.bf16.msra.mxu0 0
    %1479 = vmatprep.subr.bf16.mxu0 0
    %1480 = vmatpush2.bf16.msra.mxu0 0
    %1481 = vmatprep.subr.bf16.mxu0 0
    %1482 = vmatpush2.bf16.msra.mxu0 0
    %1483 = vmatprep.subr.bf16.mxu0 0
    %1484 = vmatpush2.bf16.msra.mxu0 0
    %1485 = vmatprep.subr.bf16.mxu0 0
    %1486 = vmatpush2.bf16.msra.mxu0 0
    %1487 = vmatprep.mubr.bf16.mxu0 0
    %1488 = vmatmul.mubr.bf16.gmra.mxu0 %v1449
    %v1489 = vpop.f32.mrf.mxu0
    %v1490 = vadd.f32 %v1446, %v1489
    %v1491 = vpop.f32.mrf.mxu0
    %v1492 = vpop.f32.mrf.mxu0
    %v1493 = vpop.f32.mrf.mxu0
    %1494 = vdwg.mxu0
    %vm1495 = vcmask 15360
    %1496 = vst.msk [vmem:[%s7] sm:$0xff] %vm1495, %v1490
    // Predicated region
    $region38: #{tpu_custom_call.1} parent=1 // pred_check
      _
    $region39: #{tpu_custom_call.1} parent=1 // pred_check_branch
      %1498 = sbr.rel (0) target = $region41
    $region40: #{tpu_custom_call.1} parent=1 // pred_region
      _
    $region41: #{tpu_custom_call.1} parent=1 // pred_fallthru
      _
    // Predicated region
    $region42: #{tpu_custom_call.1} parent=1 // pred_check
      _
    $region43: #{tpu_custom_call.1} parent=1 // pred_check_branch
      %1500 = sbr.rel (0) target = $region45
    $region44: #{tpu_custom_call.1} parent=1 // pred_region
      _
    $region45: #{tpu_custom_call.1} parent=1 // pred_fallthru
      _
    %1501 = vsyncpa [#allocation3], 1
    %1502 = vsyncpa [#allocation5], 1

</llo_original>
